<compile_context>
chip_gen: v5e
topology: v5e:2x2
jax: 0.10.0
libtpu: 0.0.40
codegen_flags: <defaults>
</compile_context>

<pallas_src>
import functools

import jax
import jax.numpy as jnp
from jax.experimental import pallas as pl
from jax.experimental.pallas import tpu as pltpu

LN_EPS = 1e-5
SEQ = 6            # 5 memory slots + 1 current token (fixed by the PyTorch module)


# ----------------------------------------------------------------------------
# in-kernel math helpers (f32)
# ----------------------------------------------------------------------------
def _erf(x):
    # Abramowitz & Stegun 7.1.26 polynomial approximation, |err| < 1.5e-7.
    # TODO(synk): switch to lax.erf if/when Mosaic has a direct lowering.
    a1, a2, a3, a4, a5 = (0.254829592, -0.284496736, 1.421413741,
                          -1.453152027, 1.061405429)
    p = 0.3275911
    s = jnp.where(x >= 0.0, 1.0, -1.0)
    ax = jnp.abs(x)
    t = pl.reciprocal(1.0 + p * ax, approx=True)          # EUP, frees VALU slots
    poly = ((((a5 * t + a4) * t + a3) * t + a2) * t + a1) * t
    return s * (1.0 - poly * jnp.exp(-ax * ax))


def _gelu_exact(x):
    # PyTorch nn.GELU() default (erf-based, not tanh approximation).
    return 0.5 * x * (1.0 + _erf(x * 0.7071067811865476))


def _layernorm(x, w, b):
    mu = jnp.mean(x, axis=-1, keepdims=True)
    var = jnp.mean((x - mu) ** 2, axis=-1, keepdims=True)
    return (x - mu) * jax.lax.rsqrt(var + LN_EPS) * w + b


# ----------------------------------------------------------------------------
# Pallas kernels
# ----------------------------------------------------------------------------
def blocks_kernel(x_ref,
                  ln1w_ref, ln1b_ref,
                  wqkv_ref, bqkv_ref, wo_ref, bo_ref,
                  ln2w_ref, ln2b_ref,
                  wfc_ref, bfc_ref, wpr_ref, bpr_ref,
                  y_ref,
                  h_ref, ctx_ref,
                  *, n_head, head_dim, batch, seq):
    """All transformer Blocks, one layer per grid step, activation resident in VMEM."""
    layer = pl.program_id(0)

    @pl.when(layer == 0)
    def _():
        h_ref[...] = x_ref[...]                      # load embeddings once

    x = h_ref[...]                                   # (B*T, E) f32 residual stream
    E = x.shape[-1]
    H, D, T = n_head, head_dim, seq
    scale = 1.0 / (D ** 0.5)

    # --- attention: fused QKV projection (one full-width bf16 matmul) -------
    xn = _layernorm(x, ln1w_ref[0], ln1b_ref[0])
    qkv = jnp.dot(xn.astype(jnp.bfloat16), wqkv_ref[0],
                  preferred_element_type=jnp.float32) + bqkv_ref[0]   # (B*T, 3E) f32
    q = qkv[:, :E] * scale                            # fold 1/sqrt(D) into q
    k = qkv[:, E:2 * E]
    v = qkv[:, 2 * E:]

    # per-(batch, head) softmax(QK^T)V, context written straight into VMEM scratch
    for b in range(batch):
        r0 = b * T
        for h in range(H):
            c0 = h * D
            qh = q[r0:r0 + T, c0:c0 + D].astype(jnp.bfloat16)
            kh = k[r0:r0 + T, c0:c0 + D].astype(jnp.bfloat16)
            vh = v[r0:r0 + T, c0:c0 + D].astype(jnp.bfloat16)
            s = jax.lax.dot_general(qh, kh, (((1,), (1,)), ((), ())),
                                    preferred_element_type=jnp.float32)   # (T, T)
            m = jnp.max(s, axis=-1, keepdims=True)
            p = jnp.exp(s - m)
            p = p * pl.reciprocal(jnp.sum(p, axis=-1, keepdims=True), approx=True)
            ctx_ref[pl.ds(r0, T), pl.ds(c0, D)] = jnp.dot(
                p.astype(jnp.bfloat16), vh, preferred_element_type=jnp.float32)

    # single full-width output projection + residual
    ctx = ctx_ref[...]                                                  # (B*T, E)
    attn_out = jnp.dot(ctx.astype(jnp.bfloat16), wo_ref[0],
                       preferred_element_type=jnp.float32) + bo_ref[0]
    x = x + attn_out

    # --- MLP -----------------------------------------------------------------
    xn2 = _layernorm(x, ln2w_ref[0], ln2b_ref[0])
    hdn = jnp.dot(xn2.astype(jnp.bfloat16), wfc_ref[0],
                  preferred_element_type=jnp.float32) + bfc_ref[0]
    hdn = _gelu_exact(hdn)
    x = x + jnp.dot(hdn.astype(jnp.bfloat16), wpr_ref[0],
                    preferred_element_type=jnp.float32) + bpr_ref[0]

    h_ref[...] = x                                   # carry to next layer

    @pl.when(layer == pl.num_programs(0) - 1)
    def _():
        y_ref[...] = x                               # write final activations once


def head_kernel(x_ref, lnfw_ref, lnfb_ref, wlm_ref, o_ref):
    """ln_f + lm_head (no bias) over the last position only, vocab-tiled."""
    xn = _layernorm(x_ref[...], lnfw_ref[...], lnfb_ref[...])
    o_ref[...] = jnp.dot(xn.astype(jnp.bfloat16), wlm_ref[...],
                         preferred_element_type=jnp.float32)


# ----------------------------------------------------------------------------
# pallas_call wrappers
# ----------------------------------------------------------------------------
def run_blocks(x_flat, layer_params, n_head, batch, seq):
    BT, E = x_flat.shape
    n_layer = layer_params[0].shape[0]
    kernel = functools.partial(blocks_kernel, n_head=n_head, head_dim=E // n_head,
                               batch=batch, seq=seq)

    in_specs = [pl.BlockSpec((BT, E), lambda l: (0, 0))]
    for arr in layer_params:
        in_specs.append(pl.BlockSpec((1,) + arr.shape[1:], lambda l: (l, 0, 0)))

    return pl.pallas_call(
        kernel,
        grid=(n_layer,),
        in_specs=in_specs,
        out_specs=pl.BlockSpec((BT, E), lambda l: (0, 0)),
        out_shape=jax.ShapeDtypeStruct((BT, E), jnp.float32),
        scratch_shapes=[pltpu.VMEM((BT, E), jnp.float32),    # resident activation
                        pltpu.VMEM((BT, E), jnp.float32)],   # attention context
        compiler_params=pltpu.CompilerParams(dimension_semantics=("arbitrary",)),
    )(x_flat, *layer_params)


def run_head(x_last, lnf_w, lnf_b, w_lm_t, tile_v=2048):
    B, E = x_last.shape
    V = w_lm_t.shape[1]
    tv = min(V, tile_v)                               # lane-dense vocab tiles
    return pl.pallas_call(
        head_kernel,
        grid=(pl.cdiv(V, tv),),
        in_specs=[
            pl.BlockSpec((B, E), lambda j: (0, 0)),
            pl.BlockSpec((1, E), lambda j: (0, 0)),
            pl.BlockSpec((1, E), lambda j: (0, 0)),
            pl.BlockSpec((E, tv), lambda j: (0, j)),
        ],
        out_specs=pl.BlockSpec((B, tv), lambda j: (0, j)),
        out_shape=jax.ShapeDtypeStruct((B, V), jnp.float32),
        compiler_params=pltpu.CompilerParams(dimension_semantics=("parallel",)),
    )(x_last, lnf_w, lnf_b, w_lm_t)


# ----------------------------------------------------------------------------
# parameters (deterministic, torch-layout) + one-time kernel re-layout
# ----------------------------------------------------------------------------
def init_params(key, vocab_size, n_embd, n_layer):
    E, std = n_embd, 0.02
    keys = jax.random.split(key, 3 + 8 * n_layer)
    p = {
        "wte": jax.random.normal(keys[0], (vocab_size, E), jnp.float32) * std,
        "wpe": jax.random.normal(keys[1], (SEQ, E), jnp.float32) * std,   # wpe_wtf
        "lnf_w": jnp.ones((E,), jnp.float32),
        "lnf_b": jnp.zeros((E,), jnp.float32),
        "w_lm": jax.random.normal(keys[2], (vocab_size, E), jnp.float32) * std,
        "layers": [],
    }
    ki = 3
    for _ in range(n_layer):
        lp = {
            "ln1_w": jnp.ones((E,), jnp.float32), "ln1_b": jnp.zeros((E,), jnp.float32),
            "w_in": jax.random.normal(keys[ki + 0], (3 * E, E), jnp.float32) * std,
            "b_in": jax.random.normal(keys[ki + 1], (3 * E,), jnp.float32) * std,
            "w_out": jax.random.normal(keys[ki + 2], (E, E), jnp.float32) * std,
            "b_out": jax.random.normal(keys[ki + 3], (E,), jnp.float32) * std,
            "ln2_w": jnp.ones((E,), jnp.float32), "ln2_b": jnp.zeros((E,), jnp.float32),
            "w_fc": jax.random.normal(keys[ki + 4], (4 * E, E), jnp.float32) * std,
            "b_fc": jax.random.normal(keys[ki + 5], (4 * E,), jnp.float32) * std,
            "w_proj": jax.random.normal(keys[ki + 6], (E, 4 * E), jnp.float32) * std,
            "b_proj": jax.random.normal(keys[ki + 7], (E,), jnp.float32) * std,
        }
        ki += 8
        p["layers"].append(lp)
    return p


def prepare_kernel_params(params):
    """Done ONCE outside forward: stack per-layer weights with a leading L dim,
    transpose into matmul-ready layout, and cast matmul weights to bf16."""
    E = params["wte"].shape[1]

    def stack(fn):
        return jnp.stack([fn(lp) for lp in params["layers"]], axis=0)

    layers = (
        stack(lambda lp: lp["ln1_w"].reshape(1, E)),                    # (L,1,E)  f32
        stack(lambda lp: lp["ln1_b"].reshape(1, E)),
        stack(lambda lp: lp["w_in"].T).astype(jnp.bfloat16),            # (L,E,3E) bf16
        stack(lambda lp: lp["b_in"].reshape(1, 3 * E)),                 # (L,1,3E) f32
        stack(lambda lp: lp["w_out"].T).astype(jnp.bfloat16),           # (L,E,E)  bf16
        stack(lambda lp: lp["b_out"].reshape(1, E)),
        stack(lambda lp: lp["ln2_w"].reshape(1, E)),
        stack(lambda lp: lp["ln2_b"].reshape(1, E)),
        stack(lambda lp: lp["w_fc"].T).astype(jnp.bfloat16),            # (L,E,4E) bf16
        stack(lambda lp: lp["b_fc"].reshape(1, 4 * E)),
        stack(lambda lp: lp["w_proj"].T).astype(jnp.bfloat16),          # (L,4E,E) bf16
        stack(lambda lp: lp["b_proj"].reshape(1, E)),
    )
    return {
        "layers": layers,
        "lnf_w": params["lnf_w"].reshape(1, E),
        "lnf_b": params["lnf_b"].reshape(1, E),
        "w_lm_t": params["w_lm"].T.astype(jnp.bfloat16),                # (E,V) bf16
    }


# ----------------------------------------------------------------------------
# full forward (glue = embedding gathers / concat / split only)
# ----------------------------------------------------------------------------
def transformer_forward(tok, mem, params, kparams, n_head):
    B = tok.shape[0]
    E = params["wte"].shape[1]
    T = SEQ

    x_tok = params["wte"][tok]                                   # (B, E)
    x = jnp.concatenate([mem, x_tok[:, None, :]], axis=1)        # (B, 6, E)
    x = x + params["wpe"][None, :, :]                            # wpe_wtf(arange(6))
    x_flat = x.reshape(B * T, E).astype(jnp.float32)

    y_flat = run_blocks(x_flat, kparams["layers"], n_head, batch=B, seq=T)
    y = y_flat.reshape(B, T, E)

    mem_out = y[:, :T - 1, :]                                    # (B, 5, E)
    x_last = y[:, T - 1, :]                                      # (B, E)
    logits = run_head(x_last, kparams["lnf_w"], kparams["lnf_b"], kparams["w_lm_t"])
    return logits, mem_out


# ----------------------------------------------------------------------------
# pure-JAX f32 reference (mirrors the PyTorch math) for verification
# ----------------------------------------------------------------------------
def _ref_ln(x, w, b):
    mu = jnp.mean(x, axis=-1, keepdims=True)
    var = jnp.mean((x - mu) ** 2, axis=-1, keepdims=True)
    return (x - mu) / jnp.sqrt(var + LN_EPS) * w + b


def reference_forward(tok, mem, params, n_head):
    B = tok.shape[0]
    E = params["wte"].shape[1]
    T, D = SEQ, params["wte"].shape[1] // n_head
    x = jnp.concatenate([mem, params["wte"][tok][:, None, :]], axis=1)
    x = x + params["wpe"][None]
    for lp in params["layers"]:
        xn = _ref_ln(x, lp["ln1_w"], lp["ln1_b"])
        qkv = xn @ lp["w_in"].T + lp["b_in"]
        q, k, v = jnp.split(qkv, 3, axis=-1)

        def heads(a):
            return a.reshape(B, T, n_head, D).transpose(0, 2, 1, 3)

        q, k, v = heads(q), heads(k), heads(v)
        s = jnp.einsum("bhqd,bhkd->bhqk", q, k) / (D ** 0.5)     # attn_mask all-False
        p = jax.nn.softmax(s, axis=-1)
        ctx = jnp.einsum("bhqk,bhkd->bhqd", p, v).transpose(0, 2, 1, 3).reshape(B, T, E)
        x = x + ctx @ lp["w_out"].T + lp["b_out"]
        xn2 = _ref_ln(x, lp["ln2_w"], lp["ln2_b"])
        h = xn2 @ lp["w_fc"].T + lp["b_fc"]
        h = 0.5 * h * (1.0 + jax.scipy.special.erf(h / jnp.sqrt(2.0)))
        x = x + h @ lp["w_proj"].T + lp["b_proj"]
    mem_out = x[:, :T - 1, :]
    xl = _ref_ln(x[:, T - 1, :], params["lnf_w"], params["lnf_b"])
    logits = xl @ params["w_lm"].T
    return logits, mem_out


# ----------------------------------------------------------------------------
if __name__ == "__main__":
    vocab_size, n_embd, n_layer, n_head = 64, 32, 2, 4
    B = 2

    key = jax.random.PRNGKey(0)
    k_tok, k_mem, k_par = jax.random.split(key, 3)
    tok = jax.random.randint(k_tok, (B,), 0, vocab_size, dtype=jnp.int32)
    mem = jax.random.normal(k_mem, (B, SEQ - 1, n_embd), jnp.float32)
    params = init_params(k_par, vocab_size, n_embd, n_layer)

    # weight re-layout / bf16 cast done once, outside the forward pass
    kparams = prepare_kernel_params(params)

    logits, mem_out = transformer_forward(tok, mem, params, kparams, n_head)
    logits, mem_out = jax.block_until_ready((logits, mem_out))

    ref_logits, ref_mem = reference_forward(tok, mem, params, n_head)
    dl = float(jnp.max(jnp.abs(logits - ref_logits)))
    dm = float(jnp.max(jnp.abs(mem_out - ref_mem)))
    assert dl < 3e-2, f"logits max abs diff {dl}"
    assert dm < 3e-2, f"mem max abs diff {dm}"

    print("KERNEL_OK")
</pallas_src>

<mosaic_0001>
module attributes {stable_mosaic.version = 11 : i64} {
  func.func @blocks_kernel(%arg0: i32, %arg1: memref<12x32xf32, #tpu.memory_space<vmem>>, %arg2: memref<1x1x32xf32, #tpu.memory_space<vmem>>, %arg3: memref<1x1x32xf32, #tpu.memory_space<vmem>>, %arg4: memref<1x32x96xbf16, #tpu.memory_space<vmem>>, %arg5: memref<1x1x96xf32, #tpu.memory_space<vmem>>, %arg6: memref<1x32x32xbf16, #tpu.memory_space<vmem>>, %arg7: memref<1x1x32xf32, #tpu.memory_space<vmem>>, %arg8: memref<1x1x32xf32, #tpu.memory_space<vmem>>, %arg9: memref<1x1x32xf32, #tpu.memory_space<vmem>>, %arg10: memref<1x32x128xbf16, #tpu.memory_space<vmem>>, %arg11: memref<1x1x128xf32, #tpu.memory_space<vmem>>, %arg12: memref<1x128x32xbf16, #tpu.memory_space<vmem>>, %arg13: memref<1x1x32xf32, #tpu.memory_space<vmem>>, %arg14: memref<12x32xf32, #tpu.memory_space<vmem>>, %arg15: memref<12x32xf32, #tpu.memory_space<vmem>>, %arg16: memref<12x32xf32, #tpu.memory_space<vmem>>) attributes {dimension_semantics = [#tpu.dimension_semantics<arbitrary>], iteration_bounds = array<i64: 2>, scalar_prefetch = 0 : i64, scratch_operands = 2 : i64, tpu.core_type = #tpu.core_type<tc>, window_params = [{pipeline_mode = #tpu.pipeline_mode<synchronous>, transform_indices = @transform_0, window_bounds = array<i64: 12, 32>}, {transform_indices = @transform_1, window_bounds = array<i64: 1, 1, 32>}, {transform_indices = @transform_2, window_bounds = array<i64: 1, 1, 32>}, {transform_indices = @transform_3, window_bounds = array<i64: 1, 32, 96>}, {transform_indices = @transform_4, window_bounds = array<i64: 1, 1, 96>}, {transform_indices = @transform_5, window_bounds = array<i64: 1, 32, 32>}, {transform_indices = @transform_6, window_bounds = array<i64: 1, 1, 32>}, {transform_indices = @transform_7, window_bounds = array<i64: 1, 1, 32>}, {transform_indices = @transform_8, window_bounds = array<i64: 1, 1, 32>}, {transform_indices = @transform_9, window_bounds = array<i64: 1, 32, 128>}, {transform_indices = @transform_10, window_bounds = array<i64: 1, 1, 128>}, {transform_indices = @transform_11, window_bounds = array<i64: 1, 128, 32>}, {transform_indices = @transform_12, window_bounds = array<i64: 1, 1, 32>}, {pipeline_mode = #tpu.pipeline_mode<synchronous>, transform_indices = @transform_13, window_bounds = array<i64: 12, 32>}]} {
    %c0_i32 = arith.constant 0 : i32
    %0 = arith.cmpi eq, %arg0, %c0_i32 : i32
    %1 = arith.extui %0 : i1 to i32
    %c0_i32_0 = arith.constant 0 : i32
    %2 = arith.cmpi ne, %1, %c0_i32_0 : i32
    scf.if %2 {
      %c0_116 = arith.constant 0 : index
      %c0_117 = arith.constant 0 : index
      %300 = vector.load %arg1[%c0_116, %c0_117] : memref<12x32xf32, #tpu.memory_space<vmem>>, vector<12x32xf32>
      %c0_118 = arith.constant 0 : index
      %c0_119 = arith.constant 0 : index
      %301 = vector.load %arg15[%c0_118, %c0_119] : memref<12x32xf32, #tpu.memory_space<vmem>>, vector<12x32xf32>
      tpu.vector_store %arg15[%c0_118, %c0_119], %300 {strides = array<i32>} : memref<12x32xf32, #tpu.memory_space<vmem>>, vector<12x32xf32>,
    } else {
    }
    %c0 = arith.constant 0 : index
    %c0_1 = arith.constant 0 : index
    %3 = vector.load %arg15[%c0, %c0_1] : memref<12x32xf32, #tpu.memory_space<vmem>>, vector<12x32xf32>
    %c0_2 = arith.constant 0 : index
    %c0_3 = arith.constant 0 : index
    %c0_4 = arith.constant 0 : index
    %4 = vector.load %arg2[%c0_2, %c0_3, %c0_4] : memref<1x1x32xf32, #tpu.memory_space<vmem>>, vector<1x1x32xf32>
    %5 = vector.shape_cast %4 : vector<1x1x32xf32> to vector<1x32xf32>
    %c0_5 = arith.constant 0 : index
    %c0_6 = arith.constant 0 : index
    %c0_7 = arith.constant 0 : index
    %6 = vector.load %arg3[%c0_5, %c0_6, %c0_7] : memref<1x1x32xf32, #tpu.memory_space<vmem>>, vector<1x1x32xf32>
    %7 = vector.shape_cast %6 : vector<1x1x32xf32> to vector<1x32xf32>
    %cst = arith.constant dense<0.000000e+00> : vector<12xf32>
    %8 = vector.multi_reduction <add>, %3, %cst [1] : vector<12x32xf32> to vector<12xf32>
    %9 = vector.shape_cast %8 : vector<12xf32> to vector<12x1xf32>
    %cst_8 = arith.constant 3.200000e+01 : f32
    %10 = vector.broadcast %cst_8 : f32 to vector<12x1xf32>
    %11 = arith.divf %9, %10 : vector<12x1xf32>
    %12 = vector.broadcast %11 : vector<12x1xf32> to vector<12x32xf32>
    %13 = arith.subf %3, %12 : vector<12x32xf32>
    %14 = arith.mulf %13, %13 : vector<12x32xf32>
    %cst_9 = arith.constant dense<0.000000e+00> : vector<12xf32>
    %15 = vector.multi_reduction <add>, %14, %cst_9 [1] : vector<12x32xf32> to vector<12xf32>
    %16 = vector.shape_cast %15 : vector<12xf32> to vector<12x1xf32>
    %cst_10 = arith.constant 3.200000e+01 : f32
    %17 = vector.broadcast %cst_10 : f32 to vector<12x1xf32>
    %18 = arith.divf %16, %17 : vector<12x1xf32>
    %19 = vector.broadcast %11 : vector<12x1xf32> to vector<12x32xf32>
    %20 = arith.subf %3, %19 : vector<12x32xf32>
    %cst_11 = arith.constant 9.99999974E-6 : f32
    %21 = vector.broadcast %cst_11 : f32 to vector<12x1xf32>
    %22 = arith.addf %18, %21 : vector<12x1xf32>
    %23 = math.rsqrt %22 : vector<12x1xf32>
    %24 = vector.broadcast %23 : vector<12x1xf32> to vector<12x32xf32>
    %25 = arith.mulf %20, %24 : vector<12x32xf32>
    %26 = vector.broadcast %5 : vector<1x32xf32> to vector<12x32xf32>
    %27 = arith.mulf %25, %26 : vector<12x32xf32>
    %28 = vector.broadcast %7 : vector<1x32xf32> to vector<12x32xf32>
    %29 = arith.addf %27, %28 : vector<12x32xf32>
    %30 = arith.truncf %29 : vector<12x32xf32> to vector<12x32xbf16>
    %c0_12 = arith.constant 0 : index
    %c0_13 = arith.constant 0 : index
    %c0_14 = arith.constant 0 : index
    %31 = vector.load %arg4[%c0_12, %c0_13, %c0_14] : memref<1x32x96xbf16, #tpu.memory_space<vmem>>, vector<1x32x96xbf16>
    %32 = vector.shape_cast %31 : vector<1x32x96xbf16> to vector<32x96xbf16>
    %cst_15 = arith.constant dense<0.000000e+00> : vector<12x96xf32>
    %33 = tpu.matmul %30, %32, %cst_15 {dimension_numbers = #tpu.dot_dimension_numbers<[1], [0], [0], [1], [0, 0, 1, 1], [], []>} : vector<12x32xbf16>, vector<32x96xbf16>, vector<12x96xf32> -> vector<12x96xf32>
    %c0_16 = arith.constant 0 : index
    %c0_17 = arith.constant 0 : index
    %c0_18 = arith.constant 0 : index
    %34 = vector.load %arg5[%c0_16, %c0_17, %c0_18] : memref<1x1x96xf32, #tpu.memory_space<vmem>>, vector<1x1x96xf32>
    %35 = vector.shape_cast %34 : vector<1x1x96xf32> to vector<1x96xf32>
    %36 = vector.broadcast %35 : vector<1x96xf32> to vector<12x96xf32>
    %37 = arith.addf %33, %36 : vector<12x96xf32>
    %38 = vector.extract_strided_slice %37 {offsets = [0, 0], sizes = [12, 32], strides = [1, 1]} : vector<12x96xf32> to vector<12x32xf32>
    %cst_19 = arith.constant 0.353553385 : f32
    %39 = vector.broadcast %cst_19 : f32 to vector<12x32xf32>
    %40 = arith.mulf %38, %39 : vector<12x32xf32>
    %41 = vector.extract_strided_slice %37 {offsets = [0, 32], sizes = [12, 32], strides = [1, 1]} : vector<12x96xf32> to vector<12x32xf32>
    %42 = vector.extract_strided_slice %37 {offsets = [0, 64], sizes = [12, 32], strides = [1, 1]} : vector<12x96xf32> to vector<12x32xf32>
    %43 = vector.extract_strided_slice %40 {offsets = [0, 0], sizes = [6, 8], strides = [1, 1]} : vector<12x32xf32> to vector<6x8xf32>
    %44 = arith.truncf %43 : vector<6x8xf32> to vector<6x8xbf16>
    %45 = vector.extract_strided_slice %41 {offsets = [0, 0], sizes = [6, 8], strides = [1, 1]} : vector<12x32xf32> to vector<6x8xf32>
    %46 = arith.truncf %45 : vector<6x8xf32> to vector<6x8xbf16>
    %47 = vector.extract_strided_slice %42 {offsets = [0, 0], sizes = [6, 8], strides = [1, 1]} : vector<12x32xf32> to vector<6x8xf32>
    %48 = arith.truncf %47 : vector<6x8xf32> to vector<6x8xbf16>
    %cst_20 = arith.constant dense<0.000000e+00> : vector<6x6xf32>
    %49 = tpu.matmul %44, %46, %cst_20 {dimension_numbers = #tpu.dot_dimension_numbers<[1], [1], [0], [0], [0, 0, 1, 0], [], []>} : vector<6x8xbf16>, vector<6x8xbf16>, vector<6x6xf32> -> vector<6x6xf32>
    %cst_21 = arith.constant dense<0xFF800000> : vector<6xf32>
    %50 = vector.multi_reduction <maximumf>, %49, %cst_21 [1] : vector<6x6xf32> to vector<6xf32>
    %51 = vector.shape_cast %50 : vector<6xf32> to vector<6x1xf32>
    %52 = vector.broadcast %51 : vector<6x1xf32> to vector<6x6xf32>
    %53 = arith.subf %49, %52 : vector<6x6xf32>
    %54 = math.exp %53 : vector<6x6xf32>
    %cst_22 = arith.constant dense<0.000000e+00> : vector<6xf32>
    %55 = vector.multi_reduction <add>, %54, %cst_22 [1] : vector<6x6xf32> to vector<6xf32>
    %56 = vector.shape_cast %55 : vector<6xf32> to vector<6x1xf32>
    %57 = tpu.reciprocal %56 {approx = true} : vector<6x1xf32> -> vector<6x1xf32>
    %58 = vector.broadcast %57 : vector<6x1xf32> to vector<6x6xf32>
    %59 = arith.mulf %54, %58 : vector<6x6xf32>
    %60 = arith.truncf %59 : vector<6x6xf32> to vector<6x6xbf16>
    %cst_23 = arith.constant dense<0.000000e+00> : vector<6x8xf32>
    %61 = tpu.matmul %60, %48, %cst_23 {dimension_numbers = #tpu.dot_dimension_numbers<[1], [0], [0], [1], [0, 0, 1, 1], [], []>} : vector<6x6xbf16>, vector<6x8xbf16>, vector<6x8xf32> -> vector<6x8xf32>
    %c0_24 = arith.constant 0 : index
    %c0_25 = arith.constant 0 : index
    %62 = vector.load %arg16[%c0_24, %c0_25] : memref<12x32xf32, #tpu.memory_space<vmem>>, vector<6x8xf32>
    tpu.vector_store %arg16[%c0_24, %c0_25], %61 {strides = array<i32>} : memref<12x32xf32, #tpu.memory_space<vmem>>, vector<6x8xf32>,
    %63 = vector.extract_strided_slice %40 {offsets = [0, 8], sizes = [6, 8], strides = [1, 1]} : vector<12x32xf32> to vector<6x8xf32>
    %64 = arith.truncf %63 : vector<6x8xf32> to vector<6x8xbf16>
    %65 = vector.extract_strided_slice %41 {offsets = [0, 8], sizes = [6, 8], strides = [1, 1]} : vector<12x32xf32> to vector<6x8xf32>
    %66 = arith.truncf %65 : vector<6x8xf32> to vector<6x8xbf16>
    %67 = vector.extract_strided_slice %42 {offsets = [0, 8], sizes = [6, 8], strides = [1, 1]} : vector<12x32xf32> to vector<6x8xf32>
    %68 = arith.truncf %67 : vector<6x8xf32> to vector<6x8xbf16>
    %cst_26 = arith.constant dense<0.000000e+00> : vector<6x6xf32>
    %69 = tpu.matmul %64, %66, %cst_26 {dimension_numbers = #tpu.dot_dimension_numbers<[1], [1], [0], [0], [0, 0, 1, 0], [], []>} : vector<6x8xbf16>, vector<6x8xbf16>, vector<6x6xf32> -> vector<6x6xf32>
    %cst_27 = arith.constant dense<0xFF800000> : vector<6xf32>
    %70 = vector.multi_reduction <maximumf>, %69, %cst_27 [1] : vector<6x6xf32> to vector<6xf32>
    %71 = vector.shape_cast %70 : vector<6xf32> to vector<6x1xf32>
    %72 = vector.broadcast %71 : vector<6x1xf32> to vector<6x6xf32>
    %73 = arith.subf %69, %72 : vector<6x6xf32>
    %74 = math.exp %73 : vector<6x6xf32>
    %cst_28 = arith.constant dense<0.000000e+00> : vector<6xf32>
    %75 = vector.multi_reduction <add>, %74, %cst_28 [1] : vector<6x6xf32> to vector<6xf32>
    %76 = vector.shape_cast %75 : vector<6xf32> to vector<6x1xf32>
    %77 = tpu.reciprocal %76 {approx = true} : vector<6x1xf32> -> vector<6x1xf32>
    %78 = vector.broadcast %77 : vector<6x1xf32> to vector<6x6xf32>
    %79 = arith.mulf %74, %78 : vector<6x6xf32>
    %80 = arith.truncf %79 : vector<6x6xf32> to vector<6x6xbf16>
    %cst_29 = arith.constant dense<0.000000e+00> : vector<6x8xf32>
    %81 = tpu.matmul %80, %68, %cst_29 {dimension_numbers = #tpu.dot_dimension_numbers<[1], [0], [0], [1], [0, 0, 1, 1], [], []>} : vector<6x6xbf16>, vector<6x8xbf16>, vector<6x8xf32> -> vector<6x8xf32>
    %c0_30 = arith.constant 0 : index
    %c8 = arith.constant 8 : index
    %82 = vector.load %arg16[%c0_30, %c8] : memref<12x32xf32, #tpu.memory_space<vmem>>, vector<6x8xf32>
    tpu.vector_store %arg16[%c0_30, %c8], %81 {strides = array<i32>} : memref<12x32xf32, #tpu.memory_space<vmem>>, vector<6x8xf32>,
    %83 = vector.extract_strided_slice %40 {offsets = [0, 16], sizes = [6, 8], strides = [1, 1]} : vector<12x32xf32> to vector<6x8xf32>
    %84 = arith.truncf %83 : vector<6x8xf32> to vector<6x8xbf16>
    %85 = vector.extract_strided_slice %41 {offsets = [0, 16], sizes = [6, 8], strides = [1, 1]} : vector<12x32xf32> to vector<6x8xf32>
    %86 = arith.truncf %85 : vector<6x8xf32> to vector<6x8xbf16>
    %87 = vector.extract_strided_slice %42 {offsets = [0, 16], sizes = [6, 8], strides = [1, 1]} : vector<12x32xf32> to vector<6x8xf32>
    %88 = arith.truncf %87 : vector<6x8xf32> to vector<6x8xbf16>
    %cst_31 = arith.constant dense<0.000000e+00> : vector<6x6xf32>
    %89 = tpu.matmul %84, %86, %cst_31 {dimension_numbers = #tpu.dot_dimension_numbers<[1], [1], [0], [0], [0, 0, 1, 0], [], []>} : vector<6x8xbf16>, vector<6x8xbf16>, vector<6x6xf32> -> vector<6x6xf32>
    %cst_32 = arith.constant dense<0xFF800000> : vector<6xf32>
    %90 = vector.multi_reduction <maximumf>, %89, %cst_32 [1] : vector<6x6xf32> to vector<6xf32>
    %91 = vector.shape_cast %90 : vector<6xf32> to vector<6x1xf32>
    %92 = vector.broadcast %91 : vector<6x1xf32> to vector<6x6xf32>
    %93 = arith.subf %89, %92 : vector<6x6xf32>
    %94 = math.exp %93 : vector<6x6xf32>
    %cst_33 = arith.constant dense<0.000000e+00> : vector<6xf32>
    %95 = vector.multi_reduction <add>, %94, %cst_33 [1] : vector<6x6xf32> to vector<6xf32>
    %96 = vector.shape_cast %95 : vector<6xf32> to vector<6x1xf32>
    %97 = tpu.reciprocal %96 {approx = true} : vector<6x1xf32> -> vector<6x1xf32>
    %98 = vector.broadcast %97 : vector<6x1xf32> to vector<6x6xf32>
    %99 = arith.mulf %94, %98 : vector<6x6xf32>
    %100 = arith.truncf %99 : vector<6x6xf32> to vector<6x6xbf16>
    %cst_34 = arith.constant dense<0.000000e+00> : vector<6x8xf32>
    %101 = tpu.matmul %100, %88, %cst_34 {dimension_numbers = #tpu.dot_dimension_numbers<[1], [0], [0], [1], [0, 0, 1, 1], [], []>} : vector<6x6xbf16>, vector<6x8xbf16>, vector<6x8xf32> -> vector<6x8xf32>
    %c0_35 = arith.constant 0 : index
    %c16 = arith.constant 16 : index
    %102 = vector.load %arg16[%c0_35, %c16] : memref<12x32xf32, #tpu.memory_space<vmem>>, vector<6x8xf32>
    tpu.vector_store %arg16[%c0_35, %c16], %101 {strides = array<i32>} : memref<12x32xf32, #tpu.memory_space<vmem>>, vector<6x8xf32>,
    %103 = vector.extract_strided_slice %40 {offsets = [0, 24], sizes = [6, 8], strides = [1, 1]} : vector<12x32xf32> to vector<6x8xf32>
    %104 = arith.truncf %103 : vector<6x8xf32> to vector<6x8xbf16>
    %105 = vector.extract_strided_slice %41 {offsets = [0, 24], sizes = [6, 8], strides = [1, 1]} : vector<12x32xf32> to vector<6x8xf32>
    %106 = arith.truncf %105 : vector<6x8xf32> to vector<6x8xbf16>
    %107 = vector.extract_strided_slice %42 {offsets = [0, 24], sizes = [6, 8], strides = [1, 1]} : vector<12x32xf32> to vector<6x8xf32>
    %108 = arith.truncf %107 : vector<6x8xf32> to vector<6x8xbf16>
    %cst_36 = arith.constant dense<0.000000e+00> : vector<6x6xf32>
    %109 = tpu.matmul %104, %106, %cst_36 {dimension_numbers = #tpu.dot_dimension_numbers<[1], [1], [0], [0], [0, 0, 1, 0], [], []>} : vector<6x8xbf16>, vector<6x8xbf16>, vector<6x6xf32> -> vector<6x6xf32>
    %cst_37 = arith.constant dense<0xFF800000> : vector<6xf32>
    %110 = vector.multi_reduction <maximumf>, %109, %cst_37 [1] : vector<6x6xf32> to vector<6xf32>
    %111 = vector.shape_cast %110 : vector<6xf32> to vector<6x1xf32>
    %112 = vector.broadcast %111 : vector<6x1xf32> to vector<6x6xf32>
    %113 = arith.subf %109, %112 : vector<6x6xf32>
    %114 = math.exp %113 : vector<6x6xf32>
    %cst_38 = arith.constant dense<0.000000e+00> : vector<6xf32>
    %115 = vector.multi_reduction <add>, %114, %cst_38 [1] : vector<6x6xf32> to vector<6xf32>
    %116 = vector.shape_cast %115 : vector<6xf32> to vector<6x1xf32>
    %117 = tpu.reciprocal %116 {approx = true} : vector<6x1xf32> -> vector<6x1xf32>
    %118 = vector.broadcast %117 : vector<6x1xf32> to vector<6x6xf32>
    %119 = arith.mulf %114, %118 : vector<6x6xf32>
    %120 = arith.truncf %119 : vector<6x6xf32> to vector<6x6xbf16>
    %cst_39 = arith.constant dense<0.000000e+00> : vector<6x8xf32>
    %121 = tpu.matmul %120, %108, %cst_39 {dimension_numbers = #tpu.dot_dimension_numbers<[1], [0], [0], [1], [0, 0, 1, 1], [], []>} : vector<6x6xbf16>, vector<6x8xbf16>, vector<6x8xf32> -> vector<6x8xf32>
    %c0_40 = arith.constant 0 : index
    %c24 = arith.constant 24 : index
    %122 = vector.load %arg16[%c0_40, %c24] : memref<12x32xf32, #tpu.memory_space<vmem>>, vector<6x8xf32>
    tpu.vector_store %arg16[%c0_40, %c24], %121 {strides = array<i32>} : memref<12x32xf32, #tpu.memory_space<vmem>>, vector<6x8xf32>,
    %123 = vector.extract_strided_slice %40 {offsets = [6, 0], sizes = [6, 8], strides = [1, 1]} : vector<12x32xf32> to vector<6x8xf32>
    %124 = arith.truncf %123 : vector<6x8xf32> to vector<6x8xbf16>
    %125 = vector.extract_strided_slice %41 {offsets = [6, 0], sizes = [6, 8], strides = [1, 1]} : vector<12x32xf32> to vector<6x8xf32>
    %126 = arith.truncf %125 : vector<6x8xf32> to vector<6x8xbf16>
    %127 = vector.extract_strided_slice %42 {offsets = [6, 0], sizes = [6, 8], strides = [1, 1]} : vector<12x32xf32> to vector<6x8xf32>
    %128 = arith.truncf %127 : vector<6x8xf32> to vector<6x8xbf16>
    %cst_41 = arith.constant dense<0.000000e+00> : vector<6x6xf32>
    %129 = tpu.matmul %124, %126, %cst_41 {dimension_numbers = #tpu.dot_dimension_numbers<[1], [1], [0], [0], [0, 0, 1, 0], [], []>} : vector<6x8xbf16>, vector<6x8xbf16>, vector<6x6xf32> -> vector<6x6xf32>
    %cst_42 = arith.constant dense<0xFF800000> : vector<6xf32>
    %130 = vector.multi_reduction <maximumf>, %129, %cst_42 [1] : vector<6x6xf32> to vector<6xf32>
    %131 = vector.shape_cast %130 : vector<6xf32> to vector<6x1xf32>
    %132 = vector.broadcast %131 : vector<6x1xf32> to vector<6x6xf32>
    %133 = arith.subf %129, %132 : vector<6x6xf32>
    %134 = math.exp %133 : vector<6x6xf32>
    %cst_43 = arith.constant dense<0.000000e+00> : vector<6xf32>
    %135 = vector.multi_reduction <add>, %134, %cst_43 [1] : vector<6x6xf32> to vector<6xf32>
    %136 = vector.shape_cast %135 : vector<6xf32> to vector<6x1xf32>
    %137 = tpu.reciprocal %136 {approx = true} : vector<6x1xf32> -> vector<6x1xf32>
    %138 = vector.broadcast %137 : vector<6x1xf32> to vector<6x6xf32>
    %139 = arith.mulf %134, %138 : vector<6x6xf32>
    %140 = arith.truncf %139 : vector<6x6xf32> to vector<6x6xbf16>
    %cst_44 = arith.constant dense<0.000000e+00> : vector<6x8xf32>
    %141 = tpu.matmul %140, %128, %cst_44 {dimension_numbers = #tpu.dot_dimension_numbers<[1], [0], [0], [1], [0, 0, 1, 1], [], []>} : vector<6x6xbf16>, vector<6x8xbf16>, vector<6x8xf32> -> vector<6x8xf32>
    %c6 = arith.constant 6 : index
    %c0_45 = arith.constant 0 : index
    %142 = vector.load %arg16[%c6, %c0_45] : memref<12x32xf32, #tpu.memory_space<vmem>>, vector<6x8xf32>
    tpu.vector_store %arg16[%c6, %c0_45], %141 {strides = array<i32>} : memref<12x32xf32, #tpu.memory_space<vmem>>, vector<6x8xf32>,
    %143 = vector.extract_strided_slice %40 {offsets = [6, 8], sizes = [6, 8], strides = [1, 1]} : vector<12x32xf32> to vector<6x8xf32>
    %144 = arith.truncf %143 : vector<6x8xf32> to vector<6x8xbf16>
    %145 = vector.extract_strided_slice %41 {offsets = [6, 8], sizes = [6, 8], strides = [1, 1]} : vector<12x32xf32> to vector<6x8xf32>
    %146 = arith.truncf %145 : vector<6x8xf32> to vector<6x8xbf16>
    %147 = vector.extract_strided_slice %42 {offsets = [6, 8], sizes = [6, 8], strides = [1, 1]} : vector<12x32xf32> to vector<6x8xf32>
    %148 = arith.truncf %147 : vector<6x8xf32> to vector<6x8xbf16>
    %cst_46 = arith.constant dense<0.000000e+00> : vector<6x6xf32>
    %149 = tpu.matmul %144, %146, %cst_46 {dimension_numbers = #tpu.dot_dimension_numbers<[1], [1], [0], [0], [0, 0, 1, 0], [], []>} : vector<6x8xbf16>, vector<6x8xbf16>, vector<6x6xf32> -> vector<6x6xf32>
    %cst_47 = arith.constant dense<0xFF800000> : vector<6xf32>
    %150 = vector.multi_reduction <maximumf>, %149, %cst_47 [1] : vector<6x6xf32> to vector<6xf32>
    %151 = vector.shape_cast %150 : vector<6xf32> to vector<6x1xf32>
    %152 = vector.broadcast %151 : vector<6x1xf32> to vector<6x6xf32>
    %153 = arith.subf %149, %152 : vector<6x6xf32>
    %154 = math.exp %153 : vector<6x6xf32>
    %cst_48 = arith.constant dense<0.000000e+00> : vector<6xf32>
    %155 = vector.multi_reduction <add>, %154, %cst_48 [1] : vector<6x6xf32> to vector<6xf32>
    %156 = vector.shape_cast %155 : vector<6xf32> to vector<6x1xf32>
    %157 = tpu.reciprocal %156 {approx = true} : vector<6x1xf32> -> vector<6x1xf32>
    %158 = vector.broadcast %157 : vector<6x1xf32> to vector<6x6xf32>
    %159 = arith.mulf %154, %158 : vector<6x6xf32>
    %160 = arith.truncf %159 : vector<6x6xf32> to vector<6x6xbf16>
    %cst_49 = arith.constant dense<0.000000e+00> : vector<6x8xf32>
    %161 = tpu.matmul %160, %148, %cst_49 {dimension_numbers = #tpu.dot_dimension_numbers<[1], [0], [0], [1], [0, 0, 1, 1], [], []>} : vector<6x6xbf16>, vector<6x8xbf16>, vector<6x8xf32> -> vector<6x8xf32>
    %c6_50 = arith.constant 6 : index
    %c8_51 = arith.constant 8 : index
    %162 = vector.load %arg16[%c6_50, %c8_51] : memref<12x32xf32, #tpu.memory_space<vmem>>, vector<6x8xf32>
    tpu.vector_store %arg16[%c6_50, %c8_51], %161 {strides = array<i32>} : memref<12x32xf32, #tpu.memory_space<vmem>>, vector<6x8xf32>,
    %163 = vector.extract_strided_slice %40 {offsets = [6, 16], sizes = [6, 8], strides = [1, 1]} : vector<12x32xf32> to vector<6x8xf32>
    %164 = arith.truncf %163 : vector<6x8xf32> to vector<6x8xbf16>
    %165 = vector.extract_strided_slice %41 {offsets = [6, 16], sizes = [6, 8], strides = [1, 1]} : vector<12x32xf32> to vector<6x8xf32>
    %166 = arith.truncf %165 : vector<6x8xf32> to vector<6x8xbf16>
    %167 = vector.extract_strided_slice %42 {offsets = [6, 16], sizes = [6, 8], strides = [1, 1]} : vector<12x32xf32> to vector<6x8xf32>
    %168 = arith.truncf %167 : vector<6x8xf32> to vector<6x8xbf16>
    %cst_52 = arith.constant dense<0.000000e+00> : vector<6x6xf32>
    %169 = tpu.matmul %164, %166, %cst_52 {dimension_numbers = #tpu.dot_dimension_numbers<[1], [1], [0], [0], [0, 0, 1, 0], [], []>} : vector<6x8xbf16>, vector<6x8xbf16>, vector<6x6xf32> -> vector<6x6xf32>
    %cst_53 = arith.constant dense<0xFF800000> : vector<6xf32>
    %170 = vector.multi_reduction <maximumf>, %169, %cst_53 [1] : vector<6x6xf32> to vector<6xf32>
    %171 = vector.shape_cast %170 : vector<6xf32> to vector<6x1xf32>
    %172 = vector.broadcast %171 : vector<6x1xf32> to vector<6x6xf32>
    %173 = arith.subf %169, %172 : vector<6x6xf32>
    %174 = math.exp %173 : vector<6x6xf32>
    %cst_54 = arith.constant dense<0.000000e+00> : vector<6xf32>
    %175 = vector.multi_reduction <add>, %174, %cst_54 [1] : vector<6x6xf32> to vector<6xf32>
    %176 = vector.shape_cast %175 : vector<6xf32> to vector<6x1xf32>
    %177 = tpu.reciprocal %176 {approx = true} : vector<6x1xf32> -> vector<6x1xf32>
    %178 = vector.broadcast %177 : vector<6x1xf32> to vector<6x6xf32>
    %179 = arith.mulf %174, %178 : vector<6x6xf32>
    %180 = arith.truncf %179 : vector<6x6xf32> to vector<6x6xbf16>
    %cst_55 = arith.constant dense<0.000000e+00> : vector<6x8xf32>
    %181 = tpu.matmul %180, %168, %cst_55 {dimension_numbers = #tpu.dot_dimension_numbers<[1], [0], [0], [1], [0, 0, 1, 1], [], []>} : vector<6x6xbf16>, vector<6x8xbf16>, vector<6x8xf32> -> vector<6x8xf32>
    %c6_56 = arith.constant 6 : index
    %c16_57 = arith.constant 16 : index
    %182 = vector.load %arg16[%c6_56, %c16_57] : memref<12x32xf32, #tpu.memory_space<vmem>>, vector<6x8xf32>
    tpu.vector_store %arg16[%c6_56, %c16_57], %181 {strides = array<i32>} : memref<12x32xf32, #tpu.memory_space<vmem>>, vector<6x8xf32>,
    %183 = vector.extract_strided_slice %40 {offsets = [6, 24], sizes = [6, 8], strides = [1, 1]} : vector<12x32xf32> to vector<6x8xf32>
    %184 = arith.truncf %183 : vector<6x8xf32> to vector<6x8xbf16>
    %185 = vector.extract_strided_slice %41 {offsets = [6, 24], sizes = [6, 8], strides = [1, 1]} : vector<12x32xf32> to vector<6x8xf32>
    %186 = arith.truncf %185 : vector<6x8xf32> to vector<6x8xbf16>
    %187 = vector.extract_strided_slice %42 {offsets = [6, 24], sizes = [6, 8], strides = [1, 1]} : vector<12x32xf32> to vector<6x8xf32>
    %188 = arith.truncf %187 : vector<6x8xf32> to vector<6x8xbf16>
    %cst_58 = arith.constant dense<0.000000e+00> : vector<6x6xf32>
    %189 = tpu.matmul %184, %186, %cst_58 {dimension_numbers = #tpu.dot_dimension_numbers<[1], [1], [0], [0], [0, 0, 1, 0], [], []>} : vector<6x8xbf16>, vector<6x8xbf16>, vector<6x6xf32> -> vector<6x6xf32>
    %cst_59 = arith.constant dense<0xFF800000> : vector<6xf32>
    %190 = vector.multi_reduction <maximumf>, %189, %cst_59 [1] : vector<6x6xf32> to vector<6xf32>
    %191 = vector.shape_cast %190 : vector<6xf32> to vector<6x1xf32>
    %192 = vector.broadcast %191 : vector<6x1xf32> to vector<6x6xf32>
    %193 = arith.subf %189, %192 : vector<6x6xf32>
    %194 = math.exp %193 : vector<6x6xf32>
    %cst_60 = arith.constant dense<0.000000e+00> : vector<6xf32>
    %195 = vector.multi_reduction <add>, %194, %cst_60 [1] : vector<6x6xf32> to vector<6xf32>
    %196 = vector.shape_cast %195 : vector<6xf32> to vector<6x1xf32>
    %197 = tpu.reciprocal %196 {approx = true} : vector<6x1xf32> -> vector<6x1xf32>
    %198 = vector.broadcast %197 : vector<6x1xf32> to vector<6x6xf32>
    %199 = arith.mulf %194, %198 : vector<6x6xf32>
    %200 = arith.truncf %199 : vector<6x6xf32> to vector<6x6xbf16>
    %cst_61 = arith.constant dense<0.000000e+00> : vector<6x8xf32>
    %201 = tpu.matmul %200, %188, %cst_61 {dimension_numbers = #tpu.dot_dimension_numbers<[1], [0], [0], [1], [0, 0, 1, 1], [], []>} : vector<6x6xbf16>, vector<6x8xbf16>, vector<6x8xf32> -> vector<6x8xf32>
    %c6_62 = arith.constant 6 : index
    %c24_63 = arith.constant 24 : index
    %202 = vector.load %arg16[%c6_62, %c24_63] : memref<12x32xf32, #tpu.memory_space<vmem>>, vector<6x8xf32>
    tpu.vector_store %arg16[%c6_62, %c24_63], %201 {strides = array<i32>} : memref<12x32xf32, #tpu.memory_space<vmem>>, vector<6x8xf32>,
    %c0_64 = arith.constant 0 : index
    %c0_65 = arith.constant 0 : index
    %203 = vector.load %arg16[%c0_64, %c0_65] : memref<12x32xf32, #tpu.memory_space<vmem>>, vector<12x32xf32>
    %204 = arith.truncf %203 : vector<12x32xf32> to vector<12x32xbf16>
    %c0_66 = arith.constant 0 : index
    %c0_67 = arith.constant 0 : index
    %c0_68 = arith.constant 0 : index
    %205 = vector.load %arg6[%c0_66, %c0_67, %c0_68] : memref<1x32x32xbf16, #tpu.memory_space<vmem>>, vector<1x32x32xbf16>
    %206 = vector.shape_cast %205 : vector<1x32x32xbf16> to vector<32x32xbf16>
    %cst_69 = arith.constant dense<0.000000e+00> : vector<12x32xf32>
    %207 = tpu.matmul %204, %206, %cst_69 {dimension_numbers = #tpu.dot_dimension_numbers<[1], [0], [0], [1], [0, 0, 1, 1], [], []>} : vector<12x32xbf16>, vector<32x32xbf16>, vector<12x32xf32> -> vector<12x32xf32>
    %c0_70 = arith.constant 0 : index
    %c0_71 = arith.constant 0 : index
    %c0_72 = arith.constant 0 : index
    %208 = vector.load %arg7[%c0_70, %c0_71, %c0_72] : memref<1x1x32xf32, #tpu.memory_space<vmem>>, vector<1x1x32xf32>
    %209 = vector.shape_cast %208 : vector<1x1x32xf32> to vector<1x32xf32>
    %210 = vector.broadcast %209 : vector<1x32xf32> to vector<12x32xf32>
    %211 = arith.addf %207, %210 : vector<12x32xf32>
    %212 = arith.addf %3, %211 : vector<12x32xf32>
    %c0_73 = arith.constant 0 : index
    %c0_74 = arith.constant 0 : index
    %c0_75 = arith.constant 0 : index
    %213 = vector.load %arg8[%c0_73, %c0_74, %c0_75] : memref<1x1x32xf32, #tpu.memory_space<vmem>>, vector<1x1x32xf32>
    %214 = vector.shape_cast %213 : vector<1x1x32xf32> to vector<1x32xf32>
    %c0_76 = arith.constant 0 : index
    %c0_77 = arith.constant 0 : index
    %c0_78 = arith.constant 0 : index
    %215 = vector.load %arg9[%c0_76, %c0_77, %c0_78] : memref<1x1x32xf32, #tpu.memory_space<vmem>>, vector<1x1x32xf32>
    %216 = vector.shape_cast %215 : vector<1x1x32xf32> to vector<1x32xf32>
    %cst_79 = arith.constant dense<0.000000e+00> : vector<12xf32>
    %217 = vector.multi_reduction <add>, %212, %cst_79 [1] : vector<12x32xf32> to vector<12xf32>
    %218 = vector.shape_cast %217 : vector<12xf32> to vector<12x1xf32>
    %cst_80 = arith.constant 3.200000e+01 : f32
    %219 = vector.broadcast %cst_80 : f32 to vector<12x1xf32>
    %220 = arith.divf %218, %219 : vector<12x1xf32>
    %221 = vector.broadcast %220 : vector<12x1xf32> to vector<12x32xf32>
    %222 = arith.subf %212, %221 : vector<12x32xf32>
    %223 = arith.mulf %222, %222 : vector<12x32xf32>
    %cst_81 = arith.constant dense<0.000000e+00> : vector<12xf32>
    %224 = vector.multi_reduction <add>, %223, %cst_81 [1] : vector<12x32xf32> to vector<12xf32>
    %225 = vector.shape_cast %224 : vector<12xf32> to vector<12x1xf32>
    %cst_82 = arith.constant 3.200000e+01 : f32
    %226 = vector.broadcast %cst_82 : f32 to vector<12x1xf32>
    %227 = arith.divf %225, %226 : vector<12x1xf32>
    %228 = vector.broadcast %220 : vector<12x1xf32> to vector<12x32xf32>
    %229 = arith.subf %212, %228 : vector<12x32xf32>
    %cst_83 = arith.constant 9.99999974E-6 : f32
    %230 = vector.broadcast %cst_83 : f32 to vector<12x1xf32>
    %231 = arith.addf %227, %230 : vector<12x1xf32>
    %232 = math.rsqrt %231 : vector<12x1xf32>
    %233 = vector.broadcast %232 : vector<12x1xf32> to vector<12x32xf32>
    %234 = arith.mulf %229, %233 : vector<12x32xf32>
    %235 = vector.broadcast %214 : vector<1x32xf32> to vector<12x32xf32>
    %236 = arith.mulf %234, %235 : vector<12x32xf32>
    %237 = vector.broadcast %216 : vector<1x32xf32> to vector<12x32xf32>
    %238 = arith.addf %236, %237 : vector<12x32xf32>
    %239 = arith.truncf %238 : vector<12x32xf32> to vector<12x32xbf16>
    %c0_84 = arith.constant 0 : index
    %c0_85 = arith.constant 0 : index
    %c0_86 = arith.constant 0 : index
    %240 = vector.load %arg10[%c0_84, %c0_85, %c0_86] : memref<1x32x128xbf16, #tpu.memory_space<vmem>>, vector<1x32x128xbf16>
    %241 = vector.shape_cast %240 : vector<1x32x128xbf16> to vector<32x128xbf16>
    %cst_87 = arith.constant dense<0.000000e+00> : vector<12x128xf32>
    %242 = tpu.matmul %239, %241, %cst_87 {dimension_numbers = #tpu.dot_dimension_numbers<[1], [0], [0], [1], [0, 0, 1, 1], [], []>} : vector<12x32xbf16>, vector<32x128xbf16>, vector<12x128xf32> -> vector<12x128xf32>
    %c0_88 = arith.constant 0 : index
    %c0_89 = arith.constant 0 : index
    %c0_90 = arith.constant 0 : index
    %243 = vector.load %arg11[%c0_88, %c0_89, %c0_90] : memref<1x1x128xf32, #tpu.memory_space<vmem>>, vector<1x1x128xf32>
    %244 = vector.shape_cast %243 : vector<1x1x128xf32> to vector<1x128xf32>
    %245 = vector.broadcast %244 : vector<1x128xf32> to vector<12x128xf32>
    %246 = arith.addf %242, %245 : vector<12x128xf32>
    %cst_91 = arith.constant 5.000000e-01 : f32
    %247 = vector.broadcast %cst_91 : f32 to vector<12x128xf32>
    %248 = arith.mulf %247, %246 : vector<12x128xf32>
    %cst_92 = arith.constant 0.707106769 : f32
    %249 = vector.broadcast %cst_92 : f32 to vector<12x128xf32>
    %250 = arith.mulf %246, %249 : vector<12x128xf32>
    %cst_93 = arith.constant 0.000000e+00 : f32
    %251 = vector.broadcast %cst_93 : f32 to vector<12x128xf32>
    %252 = arith.cmpf oge, %250, %251 : vector<12x128xf32>
    %cst_94 = arith.constant 1.000000e+00 : f32
    %cst_95 = arith.constant -1.000000e+00 : f32
    %253 = vector.broadcast %cst_94 : f32 to vector<12x128xf32>
    %254 = vector.broadcast %cst_95 : f32 to vector<12x128xf32>
    %255 = arith.select %252, %253, %254 : vector<12x128xi1>, vector<12x128xf32>
    %256 = math.absf %250 : vector<12x128xf32>
    %cst_96 = arith.constant 0.327591091 : f32
    %257 = vector.broadcast %cst_96 : f32 to vector<12x128xf32>
    %258 = arith.mulf %257, %256 : vector<12x128xf32>
    %cst_97 = arith.constant 1.000000e+00 : f32
    %259 = vector.broadcast %cst_97 : f32 to vector<12x128xf32>
    %260 = arith.addf %259, %258 : vector<12x128xf32>
    %261 = tpu.reciprocal %260 {approx = true} : vector<12x128xf32> -> vector<12x128xf32>
    %cst_98 = arith.constant 1.06140542 : f32
    %262 = vector.broadcast %cst_98 : f32 to vector<12x128xf32>
    %263 = arith.mulf %262, %261 : vector<12x128xf32>
    %cst_99 = arith.constant -1.45315206 : f32
    %264 = vector.broadcast %cst_99 : f32 to vector<12x128xf32>
    %265 = arith.addf %263, %264 : vector<12x128xf32>
    %266 = arith.mulf %265, %261 : vector<12x128xf32>
    %cst_100 = arith.constant 1.42141378 : f32
    %267 = vector.broadcast %cst_100 : f32 to vector<12x128xf32>
    %268 = arith.addf %266, %267 : vector<12x128xf32>
    %269 = arith.mulf %268, %261 : vector<12x128xf32>
    %cst_101 = arith.constant -0.284496725 : f32
    %270 = vector.broadcast %cst_101 : f32 to vector<12x128xf32>
    %271 = arith.addf %269, %270 : vector<12x128xf32>
    %272 = arith.mulf %271, %261 : vector<12x128xf32>
    %cst_102 = arith.constant 0.254829586 : f32
    %273 = vector.broadcast %cst_102 : f32 to vector<12x128xf32>
    %274 = arith.addf %272, %273 : vector<12x128xf32>
    %275 = arith.mulf %274, %261 : vector<12x128xf32>
    %cst_103 = arith.constant 0.000000e+00 : f32
    %276 = vector.broadcast %cst_103 : f32 to vector<12x128xf32>
    %277 = arith.subf %276, %256 : vector<12x128xf32>
    %278 = arith.mulf %277, %256 : vector<12x128xf32>
    %279 = math.exp %278 : vector<12x128xf32>
    %280 = arith.mulf %275, %279 : vector<12x128xf32>
    %cst_104 = arith.constant 1.000000e+00 : f32
    %281 = vector.broadcast %cst_104 : f32 to vector<12x128xf32>
    %282 = arith.subf %281, %280 : vector<12x128xf32>
    %283 = arith.mulf %255, %282 : vector<12x128xf32>
    %cst_105 = arith.constant 1.000000e+00 : f32
    %284 = vector.broadcast %cst_105 : f32 to vector<12x128xf32>
    %285 = arith.addf %284, %283 : vector<12x128xf32>
    %286 = arith.mulf %248, %285 : vector<12x128xf32>
    %287 = arith.truncf %286 : vector<12x128xf32> to vector<12x128xbf16>
    %c0_106 = arith.constant 0 : index
    %c0_107 = arith.constant 0 : index
    %c0_108 = arith.constant 0 : index
    %288 = vector.load %arg12[%c0_106, %c0_107, %c0_108] : memref<1x128x32xbf16, #tpu.memory_space<vmem>>, vector<1x128x32xbf16>
    %289 = vector.shape_cast %288 : vector<1x128x32xbf16> to vector<128x32xbf16>
    %cst_109 = arith.constant dense<0.000000e+00> : vector<12x32xf32>
    %290 = tpu.matmul %287, %289, %cst_109 {dimension_numbers = #tpu.dot_dimension_numbers<[1], [0], [0], [1], [0, 0, 1, 1], [], []>} : vector<12x128xbf16>, vector<128x32xbf16>, vector<12x32xf32> -> vector<12x32xf32>
    %291 = arith.addf %212, %290 : vector<12x32xf32>
    %c0_110 = arith.constant 0 : index
    %c0_111 = arith.constant 0 : index
    %c0_112 = arith.constant 0 : index
    %292 = vector.load %arg13[%c0_110, %c0_111, %c0_112] : memref<1x1x32xf32, #tpu.memory_space<vmem>>, vector<1x1x32xf32>
    %293 = vector.shape_cast %292 : vector<1x1x32xf32> to vector<1x32xf32>
    %294 = vector.broadcast %293 : vector<1x32xf32> to vector<12x32xf32>
    %295 = arith.addf %291, %294 : vector<12x32xf32>
    %c0_113 = arith.constant 0 : index
    %c0_114 = arith.constant 0 : index
    %296 = vector.load %arg15[%c0_113, %c0_114] : memref<12x32xf32, #tpu.memory_space<vmem>>, vector<12x32xf32>
    tpu.vector_store %arg15[%c0_113, %c0_114], %295 {strides = array<i32>} : memref<12x32xf32, #tpu.memory_space<vmem>>, vector<12x32xf32>,
    %c1_i32 = arith.constant 1 : i32
    %297 = arith.cmpi eq, %arg0, %c1_i32 : i32
    %298 = arith.extui %297 : i1 to i32
    %c0_i32_115 = arith.constant 0 : i32
    %299 = arith.cmpi ne, %298, %c0_i32_115 : i32
    scf.if %299 {
      %c0_116 = arith.constant 0 : index
      %c0_117 = arith.constant 0 : index
      %300 = vector.load %arg14[%c0_116, %c0_117] : memref<12x32xf32, #tpu.memory_space<vmem>>, vector<12x32xf32>
      tpu.vector_store %arg14[%c0_116, %c0_117], %295 {strides = array<i32>} : memref<12x32xf32, #tpu.memory_space<vmem>>, vector<12x32xf32>,
    } else {
    }
    return
  }
  func.func @transform_0(%arg0: i32) -> (i32, i32) {
    %c0_i32 = arith.constant 0 : i32
    %c0_i32_0 = arith.constant 0 : i32
    %c0_i32_1 = arith.constant 0 : i32
    return %c0_i32, %c0_i32_0 : i32, i32
  }
  func.func @transform_1(%arg0: i32) -> (i32, i32, i32) {
    %c0_i32 = arith.constant 0 : i32
    %c0_i32_0 = arith.constant 0 : i32
    %c0_i32_1 = arith.constant 0 : i32
    return %arg0, %c0_i32, %c0_i32_0 : i32, i32, i32
  }
  func.func @transform_2(%arg0: i32) -> (i32, i32, i32) {
    %c0_i32 = arith.constant 0 : i32
    %c0_i32_0 = arith.constant 0 : i32
    %c0_i32_1 = arith.constant 0 : i32
    return %arg0, %c0_i32, %c0_i32_0 : i32, i32, i32
  }
  func.func @transform_3(%arg0: i32) -> (i32, i32, i32) {
    %c0_i32 = arith.constant 0 : i32
    %c0_i32_0 = arith.constant 0 : i32
    %c0_i32_1 = arith.constant 0 : i32
    return %arg0, %c0_i32, %c0_i32_0 : i32, i32, i32
  }
  func.func @transform_4(%arg0: i32) -> (i32, i32, i32) {
    %c0_i32 = arith.constant 0 : i32
    %c0_i32_0 = arith.constant 0 : i32
    %c0_i32_1 = arith.constant 0 : i32
    return %arg0, %c0_i32, %c0_i32_0 : i32, i32, i32
  }
  func.func @transform_5(%arg0: i32) -> (i32, i32, i32) {
    %c0_i32 = arith.constant 0 : i32
    %c0_i32_0 = arith.constant 0 : i32
    %c0_i32_1 = arith.constant 0 : i32
    return %arg0, %c0_i32, %c0_i32_0 : i32, i32, i32
  }
  func.func @transform_6(%arg0: i32) -> (i32, i32, i32) {
    %c0_i32 = arith.constant 0 : i32
    %c0_i32_0 = arith.constant 0 : i32
    %c0_i32_1 = arith.constant 0 : i32
    return %arg0, %c0_i32, %c0_i32_0 : i32, i32, i32
  }
  func.func @transform_7(%arg0: i32) -> (i32, i32, i32) {
    %c0_i32 = arith.constant 0 : i32
    %c0_i32_0 = arith.constant 0 : i32
    %c0_i32_1 = arith.constant 0 : i32
    return %arg0, %c0_i32, %c0_i32_0 : i32, i32, i32
  }
  func.func @transform_8(%arg0: i32) -> (i32, i32, i32) {
    %c0_i32 = arith.constant 0 : i32
    %c0_i32_0 = arith.constant 0 : i32
    %c0_i32_1 = arith.constant 0 : i32
    return %arg0, %c0_i32, %c0_i32_0 : i32, i32, i32
  }
  func.func @transform_9(%arg0: i32) -> (i32, i32, i32) {
    %c0_i32 = arith.constant 0 : i32
    %c0_i32_0 = arith.constant 0 : i32
    %c0_i32_1 = arith.constant 0 : i32
    return %arg0, %c0_i32, %c0_i32_0 : i32, i32, i32
  }
  func.func @transform_10(%arg0: i32) -> (i32, i32, i32) {
    %c0_i32 = arith.constant 0 : i32
    %c0_i32_0 = arith.constant 0 : i32
    %c0_i32_1 = arith.constant 0 : i32
    return %arg0, %c0_i32, %c0_i32_0 : i32, i32, i32
  }
  func.func @transform_11(%arg0: i32) -> (i32, i32, i32) {
    %c0_i32 = arith.constant 0 : i32
    %c0_i32_0 = arith.constant 0 : i32
    %c0_i32_1 = arith.constant 0 : i32
    return %arg0, %c0_i32, %c0_i32_0 : i32, i32, i32
  }
  func.func @transform_12(%arg0: i32) -> (i32, i32, i32) {
    %c0_i32 = arith.constant 0 : i32
    %c0_i32_0 = arith.constant 0 : i32
    %c0_i32_1 = arith.constant 0 : i32
    return %arg0, %c0_i32, %c0_i32_0 : i32, i32, i32
  }
  func.func @transform_13(%arg0: i32) -> (i32, i32) {
    %c0_i32 = arith.constant 0 : i32
    %c0_i32_0 = arith.constant 0 : i32
    %c0_i32_1 = arith.constant 0 : i32
    return %c0_i32, %c0_i32_0 : i32, i32
  }
}

</mosaic_0001>

<llo_original>
// kernel: tpu_custom_call.1
$region0: #{tpu_custom_call.1}
  #allocation0 [shape = 'u32[]', space=smem, size = 0x4, offset = 0x4, fixed_abs, tag = 'smem constant byte address 0x4 - core index']
  #allocation1 [shape = 'u32[72,128]{1,0:T(1,128)}', space=vmem, size = 0x9000, scoped, tag = 'internal scratch']
  #allocation2 [shape = 'f32[12,32]{1,0:T(8,128)}', space=vmem, size = 0x2000, scoped, tag = 'scratch operand']
  #allocation3 [shape = 'f32[12,32]{1,0:T(8,128)}', space=vmem, size = 0x2000, scoped, tag = 'scratch operand']
  %s0 = inlined_call_operand.vmem [shape: f32[12,32], index: 0, kind: input, shape index: {}]
  %s1 = inlined_call_operand.vmem [shape: f32[2,1,32], index: 1, kind: input, shape index: {}]
  %s2 = inlined_call_operand.vmem [shape: f32[2,1,32], index: 2, kind: input, shape index: {}]
  %s3 = inlined_call_operand.vmem [shape: bf16[2,32,96], index: 3, kind: input, shape index: {}]
  %s4 = inlined_call_operand.vmem [shape: f32[2,1,96], index: 4, kind: input, shape index: {}]
  %s5 = inlined_call_operand.vmem [shape: bf16[2,32,32], index: 5, kind: input, shape index: {}]
  %s6 = inlined_call_operand.vmem [shape: f32[2,1,32], index: 6, kind: input, shape index: {}]
  %s7 = inlined_call_operand.vmem [shape: f32[2,1,32], index: 7, kind: input, shape index: {}]
  %s8 = inlined_call_operand.vmem [shape: f32[2,1,32], index: 8, kind: input, shape index: {}]
  %s9 = inlined_call_operand.vmem [shape: bf16[2,32,128], index: 9, kind: input, shape index: {}]
  %s10 = inlined_call_operand.vmem [shape: f32[2,1,128], index: 10, kind: input, shape index: {}]
  %s11 = inlined_call_operand.vmem [shape: bf16[2,128,32], index: 11, kind: input, shape index: {}]
  %s12 = inlined_call_operand.vmem [shape: f32[2,1,32], index: 12, kind: input, shape index: {}]
  %s13 = inlined_call_operand.hbm [shape: f32[12,32], index: 13, kind: output, shape index: {}]
  %s14 = sld [smem:[#allocation0]]
  $region93: #{tpu_custom_call.1} parent=0
    _
  %s16 = ssub.s32 1, %s14
  %s17 = scalar_select 0, %s16, %s14
  $region1: #{tpu_custom_call.1} parent=0
    #allocation4 [shape = 'u8[8192]{0}', space=vmem, size = 0x2000, scoped, tag = 'output window, operand 0, single buffered']
    #allocation5 [shape = 's32[2]{0}', space=sflag, size = 0x8, scoped, tag = 'scoped memory for tpu_custom_call.1']
    %18 = vsyncpa [#allocation5], 0
    loop: start=0, step=1, limit=4
    $region2: #{tpu_custom_call.1} parent=1 // loop_pre_header
      _
    $region3: #{tpu_custom_call.1} parent=1 // loop_header
      %s20 = sphi 0, %s24
      %p21 = scmp.ge.s32.totalorder %s20, 4
      %s28 = sphi 0, %s28
      %s30 = sphi 0, %s28
      %s31 = sphi 0, %s30
      %s45 = sphi 0, %s31
      %s51 = sphi 0, %s53
      %s54 = sphi 0, %s51
      %s55 = sphi 0, %s54
      %s71 = sphi 0, %s55
      %s77 = sphi 0, %s79
      %s80 = sphi 0, %s77
      %s81 = sphi 0, %s80
      %s97 = sphi 0, %s81
      %s103 = sphi 0, %s105
      %s106 = sphi 0, %s103
      %s107 = sphi 0, %s106
      %s123 = sphi 0, %s107
      %s129 = sphi 0, %s131
      %s132 = sphi 0, %s129
      %s133 = sphi 0, %s132
      %s149 = sphi 0, %s133
      %s155 = sphi 0, %s157
      %s158 = sphi 0, %s155
      %s159 = sphi 0, %s158
      %s175 = sphi 0, %s159
      %s181 = sphi 0, %s183
      %s184 = sphi 0, %s181
      %s185 = sphi 0, %s184
      %s201 = sphi 0, %s185
      %s207 = sphi 0, %s209
      %s210 = sphi 0, %s207
      %s211 = sphi 0, %s210
      %s227 = sphi 0, %s211
      %s233 = sphi 0, %s235
      %s236 = sphi 0, %s233
      %s237 = sphi 0, %s236
      %s253 = sphi 0, %s237
      %s259 = sphi 0, %s261
      %s262 = sphi 0, %s259
      %s263 = sphi 0, %s262
      %s279 = sphi 0, %s263
      %s285 = sphi 0, %s287
      %s288 = sphi 0, %s285
      %s289 = sphi 0, %s288
      %s305 = sphi 0, %s289
      %s311 = sphi 0, %s313
      %s314 = sphi 0, %s311
      %s315 = sphi 0, %s314
      %s331 = sphi 0, %s315
      %s337 = sphi 0, %s339
      %s340 = sphi 0, %s337
      %s341 = sphi 0, %s340
      %s357 = sphi 0, %s341
      %s361 = sphi 0, %s361
      %s363 = sphi 0, %s361
      %s364 = sphi 0, %s363
      %s378 = sphi 0, %s364
    $region4: #{tpu_custom_call.1} parent=1 // loop_header_branch
      %23 = sbr.rel (%p21) target = $region8
    $region5: #{tpu_custom_call.1} parent=1 // loop_body
      %s25 = ssub.s32 %s20, 1
      %s26 = ssub.s32 %s20, 2
      %s27 = sadd.s32 %s20, 1
      %s29 = sadd.s32 %s28, 1
      %p32 = scmp.eq.s32.totalorder %s20, 1
      %p33 = scmp.ne.s32.totalorder %s28, %s30
      %p34 = scmp.eq.s32.totalorder %s20, 0
      %p35 = por %p33, %p34
      %p36 = scmp.ne.s32.totalorder %s28, %s30
      %p37 = scmp.eq.s32.totalorder %s25, 1
      %p38 = por %p36, %p37
      %p39 = scmp.ne.s32.totalorder %s30, %s31
      %p40 = scmp.eq.s32.totalorder %s25, 0
      %p41 = por %p39, %p40
      %p42 = scmp.ne.s32.totalorder %s30, %s31
      %p43 = scmp.eq.s32.totalorder %s26, 1
      %p44 = por %p42, %p43
      %p46 = scmp.ne.s32.totalorder %s31, %s45
      %p47 = scmp.eq.s32.totalorder %s26, 0
      %p48 = por %p46, %p47
      %s49 = ssub.s32 %s20, %s27
      %p50 = scmp.eq.s32.totalorder %s49, 0
      %s52 = sadd.s32 %s51, 1
      %s53 = scalar_select %p50, %s51, %s52
      %p56 = pneg %p50
      %p57 = scmp.eq.s32.totalorder %s20, 1
      %p58 = por %p56, %p57
      %p59 = scmp.ne.s32.totalorder %s51, %s54
      %p60 = scmp.eq.s32.totalorder %s20, 0
      %p61 = por %p59, %p60
      %p62 = scmp.ne.s32.totalorder %s51, %s54
      %p63 = scmp.eq.s32.totalorder %s25, 1
      %p64 = por %p62, %p63
      %p65 = scmp.ne.s32.totalorder %s54, %s55
      %p66 = scmp.eq.s32.totalorder %s25, 0
      %p67 = por %p65, %p66
      %p68 = scmp.ne.s32.totalorder %s54, %s55
      %p69 = scmp.eq.s32.totalorder %s26, 1
      %p70 = por %p68, %p69
      %p72 = scmp.ne.s32.totalorder %s55, %s71
      %p73 = scmp.eq.s32.totalorder %s26, 0
      %p74 = por %p72, %p73
      %s75 = ssub.s32 %s20, %s27
      %p76 = scmp.eq.s32.totalorder %s75, 0
      %s78 = sadd.s32 %s77, 1
      %s79 = scalar_select %p76, %s77, %s78
      %p82 = pneg %p76
      %p83 = scmp.eq.s32.totalorder %s20, 1
      %p84 = por %p82, %p83
      %p85 = scmp.ne.s32.totalorder %s77, %s80
      %p86 = scmp.eq.s32.totalorder %s20, 0
      %p87 = por %p85, %p86
      %p88 = scmp.ne.s32.totalorder %s77, %s80
      %p89 = scmp.eq.s32.totalorder %s25, 1
      %p90 = por %p88, %p89
      %p91 = scmp.ne.s32.totalorder %s80, %s81
      %p92 = scmp.eq.s32.totalorder %s25, 0
      %p93 = por %p91, %p92
      %p94 = scmp.ne.s32.totalorder %s80, %s81
      %p95 = scmp.eq.s32.totalorder %s26, 1
      %p96 = por %p94, %p95
      %p98 = scmp.ne.s32.totalorder %s81, %s97
      %p99 = scmp.eq.s32.totalorder %s26, 0
      %p100 = por %p98, %p99
      %s101 = ssub.s32 %s20, %s27
      %p102 = scmp.eq.s32.totalorder %s101, 0
      %s104 = sadd.s32 %s103, 1
      %s105 = scalar_select %p102, %s103, %s104
      %p108 = pneg %p102
      %p109 = scmp.eq.s32.totalorder %s20, 1
      %p110 = por %p108, %p109
      %p111 = scmp.ne.s32.totalorder %s103, %s106
      %p112 = scmp.eq.s32.totalorder %s20, 0
      %p113 = por %p111, %p112
      %p114 = scmp.ne.s32.totalorder %s103, %s106
      %p115 = scmp.eq.s32.totalorder %s25, 1
      %p116 = por %p114, %p115
      %p117 = scmp.ne.s32.totalorder %s106, %s107
      %p118 = scmp.eq.s32.totalorder %s25, 0
      %p119 = por %p117, %p118
      %p120 = scmp.ne.s32.totalorder %s106, %s107
      %p121 = scmp.eq.s32.totalorder %s26, 1
      %p122 = por %p120, %p121
      %p124 = scmp.ne.s32.totalorder %s107, %s123
      %p125 = scmp.eq.s32.totalorder %s26, 0
      %p126 = por %p124, %p125
      %s127 = ssub.s32 %s20, %s27
      %p128 = scmp.eq.s32.totalorder %s127, 0
      %s130 = sadd.s32 %s129, 1
      %s131 = scalar_select %p128, %s129, %s130
      %p134 = pneg %p128
      %p135 = scmp.eq.s32.totalorder %s20, 1
      %p136 = por %p134, %p135
      %p137 = scmp.ne.s32.totalorder %s129, %s132
      %p138 = scmp.eq.s32.totalorder %s20, 0
      %p139 = por %p137, %p138
      %p140 = scmp.ne.s32.totalorder %s129, %s132
      %p141 = scmp.eq.s32.totalorder %s25, 1
      %p142 = por %p140, %p141
      %p143 = scmp.ne.s32.totalorder %s132, %s133
      %p144 = scmp.eq.s32.totalorder %s25, 0
      %p145 = por %p143, %p144
      %p146 = scmp.ne.s32.totalorder %s132, %s133
      %p147 = scmp.eq.s32.totalorder %s26, 1
      %p148 = por %p146, %p147
      %p150 = scmp.ne.s32.totalorder %s133, %s149
      %p151 = scmp.eq.s32.totalorder %s26, 0
      %p152 = por %p150, %p151
      %s153 = ssub.s32 %s20, %s27
      %p154 = scmp.eq.s32.totalorder %s153, 0
      %s156 = sadd.s32 %s155, 1
      %s157 = scalar_select %p154, %s155, %s156
      %p160 = pneg %p154
      %p161 = scmp.eq.s32.totalorder %s20, 1
      %p162 = por %p160, %p161
      %p163 = scmp.ne.s32.totalorder %s155, %s158
      %p164 = scmp.eq.s32.totalorder %s20, 0
      %p165 = por %p163, %p164
      %p166 = scmp.ne.s32.totalorder %s155, %s158
      %p167 = scmp.eq.s32.totalorder %s25, 1
      %p168 = por %p166, %p167
      %p169 = scmp.ne.s32.totalorder %s158, %s159
      %p170 = scmp.eq.s32.totalorder %s25, 0
      %p171 = por %p169, %p170
      %p172 = scmp.ne.s32.totalorder %s158, %s159
      %p173 = scmp.eq.s32.totalorder %s26, 1
      %p174 = por %p172, %p173
      %p176 = scmp.ne.s32.totalorder %s159, %s175
      %p177 = scmp.eq.s32.totalorder %s26, 0
      %p178 = por %p176, %p177
      %s179 = ssub.s32 %s20, %s27
      %p180 = scmp.eq.s32.totalorder %s179, 0
      %s182 = sadd.s32 %s181, 1
      %s183 = scalar_select %p180, %s181, %s182
      %p186 = pneg %p180
      %p187 = scmp.eq.s32.totalorder %s20, 1
      %p188 = por %p186, %p187
      %p189 = scmp.ne.s32.totalorder %s181, %s184
      %p190 = scmp.eq.s32.totalorder %s20, 0
      %p191 = por %p189, %p190
      %p192 = scmp.ne.s32.totalorder %s181, %s184
      %p193 = scmp.eq.s32.totalorder %s25, 1
      %p194 = por %p192, %p193
      %p195 = scmp.ne.s32.totalorder %s184, %s185
      %p196 = scmp.eq.s32.totalorder %s25, 0
      %p197 = por %p195, %p196
      %p198 = scmp.ne.s32.totalorder %s184, %s185
      %p199 = scmp.eq.s32.totalorder %s26, 1
      %p200 = por %p198, %p199
      %p202 = scmp.ne.s32.totalorder %s185, %s201
      %p203 = scmp.eq.s32.totalorder %s26, 0
      %p204 = por %p202, %p203
      %s205 = ssub.s32 %s20, %s27
      %p206 = scmp.eq.s32.totalorder %s205, 0
      %s208 = sadd.s32 %s207, 1
      %s209 = scalar_select %p206, %s207, %s208
      %p212 = pneg %p206
      %p213 = scmp.eq.s32.totalorder %s20, 1
      %p214 = por %p212, %p213
      %p215 = scmp.ne.s32.totalorder %s207, %s210
      %p216 = scmp.eq.s32.totalorder %s20, 0
      %p217 = por %p215, %p216
      %p218 = scmp.ne.s32.totalorder %s207, %s210
      %p219 = scmp.eq.s32.totalorder %s25, 1
      %p220 = por %p218, %p219
      %p221 = scmp.ne.s32.totalorder %s210, %s211
      %p222 = scmp.eq.s32.totalorder %s25, 0
      %p223 = por %p221, %p222
      %p224 = scmp.ne.s32.totalorder %s210, %s211
      %p225 = scmp.eq.s32.totalorder %s26, 1
      %p226 = por %p224, %p225
      %p228 = scmp.ne.s32.totalorder %s211, %s227
      %p229 = scmp.eq.s32.totalorder %s26, 0
      %p230 = por %p228, %p229
      %s231 = ssub.s32 %s20, %s27
      %p232 = scmp.eq.s32.totalorder %s231, 0
      %s234 = sadd.s32 %s233, 1
      %s235 = scalar_select %p232, %s233, %s234
      %p238 = pneg %p232
      %p239 = scmp.eq.s32.totalorder %s20, 1
      %p240 = por %p238, %p239
      %p241 = scmp.ne.s32.totalorder %s233, %s236
      %p242 = scmp.eq.s32.totalorder %s20, 0
      %p243 = por %p241, %p242
      %p244 = scmp.ne.s32.totalorder %s233, %s236
      %p245 = scmp.eq.s32.totalorder %s25, 1
      %p246 = por %p244, %p245
      %p247 = scmp.ne.s32.totalorder %s236, %s237
      %p248 = scmp.eq.s32.totalorder %s25, 0
      %p249 = por %p247, %p248
      %p250 = scmp.ne.s32.totalorder %s236, %s237
      %p251 = scmp.eq.s32.totalorder %s26, 1
      %p252 = por %p250, %p251
      %p254 = scmp.ne.s32.totalorder %s237, %s253
      %p255 = scmp.eq.s32.totalorder %s26, 0
      %p256 = por %p254, %p255
      %s257 = ssub.s32 %s20, %s27
      %p258 = scmp.eq.s32.totalorder %s257, 0
      %s260 = sadd.s32 %s259, 1
      %s261 = scalar_select %p258, %s259, %s260
      %p264 = pneg %p258
      %p265 = scmp.eq.s32.totalorder %s20, 1
      %p266 = por %p264, %p265
      %p267 = scmp.ne.s32.totalorder %s259, %s262
      %p268 = scmp.eq.s32.totalorder %s20, 0
      %p269 = por %p267, %p268
      %p270 = scmp.ne.s32.totalorder %s259, %s262
      %p271 = scmp.eq.s32.totalorder %s25, 1
      %p272 = por %p270, %p271
      %p273 = scmp.ne.s32.totalorder %s262, %s263
      %p274 = scmp.eq.s32.totalorder %s25, 0
      %p275 = por %p273, %p274
      %p276 = scmp.ne.s32.totalorder %s262, %s263
      %p277 = scmp.eq.s32.totalorder %s26, 1
      %p278 = por %p276, %p277
      %p280 = scmp.ne.s32.totalorder %s263, %s279
      %p281 = scmp.eq.s32.totalorder %s26, 0
      %p282 = por %p280, %p281
      %s283 = ssub.s32 %s20, %s27
      %p284 = scmp.eq.s32.totalorder %s283, 0
      %s286 = sadd.s32 %s285, 1
      %s287 = scalar_select %p284, %s285, %s286
      %p290 = pneg %p284
      %p291 = scmp.eq.s32.totalorder %s20, 1
      %p292 = por %p290, %p291
      %p293 = scmp.ne.s32.totalorder %s285, %s288
      %p294 = scmp.eq.s32.totalorder %s20, 0
      %p295 = por %p293, %p294
      %p296 = scmp.ne.s32.totalorder %s285, %s288
      %p297 = scmp.eq.s32.totalorder %s25, 1
      %p298 = por %p296, %p297
      %p299 = scmp.ne.s32.totalorder %s288, %s289
      %p300 = scmp.eq.s32.totalorder %s25, 0
      %p301 = por %p299, %p300
      %p302 = scmp.ne.s32.totalorder %s288, %s289
      %p303 = scmp.eq.s32.totalorder %s26, 1
      %p304 = por %p302, %p303
      %p306 = scmp.ne.s32.totalorder %s289, %s305
      %p307 = scmp.eq.s32.totalorder %s26, 0
      %p308 = por %p306, %p307
      %s309 = ssub.s32 %s20, %s27
      %p310 = scmp.eq.s32.totalorder %s309, 0
      %s312 = sadd.s32 %s311, 1
      %s313 = scalar_select %p310, %s311, %s312
      %p316 = pneg %p310
      %p317 = scmp.eq.s32.totalorder %s20, 1
      %p318 = por %p316, %p317
      %p319 = scmp.ne.s32.totalorder %s311, %s314
      %p320 = scmp.eq.s32.totalorder %s20, 0
      %p321 = por %p319, %p320
      %p322 = scmp.ne.s32.totalorder %s311, %s314
      %p323 = scmp.eq.s32.totalorder %s25, 1
      %p324 = por %p322, %p323
      %p325 = scmp.ne.s32.totalorder %s314, %s315
      %p326 = scmp.eq.s32.totalorder %s25, 0
      %p327 = por %p325, %p326
      %p328 = scmp.ne.s32.totalorder %s314, %s315
      %p329 = scmp.eq.s32.totalorder %s26, 1
      %p330 = por %p328, %p329
      %p332 = scmp.ne.s32.totalorder %s315, %s331
      %p333 = scmp.eq.s32.totalorder %s26, 0
      %p334 = por %p332, %p333
      %s335 = ssub.s32 %s20, %s27
      %p336 = scmp.eq.s32.totalorder %s335, 0
      %s338 = sadd.s32 %s337, 1
      %s339 = scalar_select %p336, %s337, %s338
      %p342 = pneg %p336
      %p343 = scmp.eq.s32.totalorder %s20, 1
      %p344 = por %p342, %p343
      %p345 = scmp.ne.s32.totalorder %s337, %s340
      %p346 = scmp.eq.s32.totalorder %s20, 0
      %p347 = por %p345, %p346
      %p348 = scmp.ne.s32.totalorder %s337, %s340
      %p349 = scmp.eq.s32.totalorder %s25, 1
      %p350 = por %p348, %p349
      %p351 = scmp.ne.s32.totalorder %s340, %s341
      %p352 = scmp.eq.s32.totalorder %s25, 0
      %p353 = por %p351, %p352
      %p354 = scmp.ne.s32.totalorder %s340, %s341
      %p355 = scmp.eq.s32.totalorder %s26, 1
      %p356 = por %p354, %p355
      %p358 = scmp.ne.s32.totalorder %s341, %s357
      %p359 = scmp.eq.s32.totalorder %s26, 0
      %p360 = por %p358, %p359
      %s362 = sadd.s32 %s361, 1
      %p365 = scmp.eq.s32.totalorder %s20, 1
      %p366 = scmp.ne.s32.totalorder %s361, %s363
      %p367 = scmp.eq.s32.totalorder %s20, 0
      %p368 = por %p366, %p367
      %p369 = scmp.ne.s32.totalorder %s361, %s363
      %p370 = scmp.eq.s32.totalorder %s25, 1
      %p371 = por %p369, %p370
      %p372 = scmp.ne.s32.totalorder %s363, %s364
      %p373 = scmp.eq.s32.totalorder %s25, 0
      %p374 = por %p372, %p373
      %p375 = scmp.ne.s32.totalorder %s363, %s364
      %p376 = scmp.eq.s32.totalorder %s26, 1
      %p377 = por %p375, %p376
      %p379 = scmp.ne.s32.totalorder %s364, %s378
      %p380 = scmp.eq.s32.totalorder %s26, 0
      %p381 = por %p379, %p380
      %p382 = scmp.le.s32.totalorder 1, %s20
      %p383 = scmp.lt.s32.totalorder %s20, 3
      %p384 = pnand %p382, %p383
      %p385 = pneg %p384
      // Predicated region
      $region9: #{tpu_custom_call.1} parent=5 // pred_check
        _
      $region10: #{tpu_custom_call.1} parent=5 // pred_check_branch
        %387 = sbr.rel (%p384) target = $region12
      $region11: #{tpu_custom_call.1} parent=5 // pred_region
        %s388 = ssub.s32 %s20, 1
        // Predicated region
        $region13: #{tpu_custom_call.1} parent=11 // pred_check
          %p389 = pneg %p41
        $region14: #{tpu_custom_call.1} parent=11 // pred_check_branch
          %391 = sbr.rel (%p389) target = $region16
        $region15: #{tpu_custom_call.1} parent=11 // pred_region
          _
        $region16: #{tpu_custom_call.1} parent=11 // pred_fallthru
          _
      $region12: #{tpu_custom_call.1} parent=5 // pred_fallthru
        _
      %p392 = scmp.lt.s32.totalorder %s20, 2
      // Predicated region
      $region17: #{tpu_custom_call.1} parent=5 // pred_check
        %p393 = pneg %p392
      $region18: #{tpu_custom_call.1} parent=5 // pred_check_branch
        %395 = sbr.rel (%p393) target = $region20
      $region19: #{tpu_custom_call.1} parent=5 // pred_region
        // Predicated region
        $region21: #{tpu_custom_call.1} parent=19 // pred_check
          %p396 = pneg %p61
        $region22: #{tpu_custom_call.1} parent=19 // pred_check_branch
          %398 = sbr.rel (%p396) target = $region24
        $region23: #{tpu_custom_call.1} parent=19 // pred_region
          %p399 = scmp.lt.s32.totalorder %s20, 1
          %s400 = scalar_select %p399, %s20, 1
          %s401 = scalar_lea.vmem %s1, %s400
        $region24: #{tpu_custom_call.1} parent=19 // pred_fallthru
          _
        // Predicated region
        $region25: #{tpu_custom_call.1} parent=19 // pred_check
          %p402 = pneg %p87
        $region26: #{tpu_custom_call.1} parent=19 // pred_check_branch
          %404 = sbr.rel (%p402) target = $region28
        $region27: #{tpu_custom_call.1} parent=19 // pred_region
          %p405 = scmp.lt.s32.totalorder %s20, 1
          %s406 = scalar_select %p405, %s20, 1
          %s407 = scalar_lea.vmem %s2, %s406
        $region28: #{tpu_custom_call.1} parent=19 // pred_fallthru
          _
        // Predicated region
        $region29: #{tpu_custom_call.1} parent=19 // pred_check
          %p408 = pneg %p113
        $region30: #{tpu_custom_call.1} parent=19 // pred_check_branch
          %410 = sbr.rel (%p408) target = $region32
        $region31: #{tpu_custom_call.1} parent=19 // pred_region
          %p411 = scmp.lt.s32.totalorder %s20, 1
          %s412 = scalar_select %p411, %s20, 1
          %s413 = smul.addr %s412, 4
          %s414 = smul.addr %s413, 4
          %s415 = scalar_lea.vmem %s3, %s414
        $region32: #{tpu_custom_call.1} parent=19 // pred_fallthru
          _
        // Predicated region
        $region33: #{tpu_custom_call.1} parent=19 // pred_check
          %p416 = pneg %p139
        $region34: #{tpu_custom_call.1} parent=19 // pred_check_branch
          %418 = sbr.rel (%p416) target = $region36
        $region35: #{tpu_custom_call.1} parent=19 // pred_region
          %p419 = scmp.lt.s32.totalorder %s20, 1
          %s420 = scalar_select %p419, %s20, 1
          %s421 = scalar_lea.vmem %s4, %s420
        $region36: #{tpu_custom_call.1} parent=19 // pred_fallthru
          _
        // Predicated region
        $region37: #{tpu_custom_call.1} parent=19 // pred_check
          %p422 = pneg %p165
        $region38: #{tpu_custom_call.1} parent=19 // pred_check_branch
          %424 = sbr.rel (%p422) target = $region40
        $region39: #{tpu_custom_call.1} parent=19 // pred_region
          %p425 = scmp.lt.s32.totalorder %s20, 1
          %s426 = scalar_select %p425, %s20, 1
          %s427 = smul.addr %s426, 4
          %s428 = smul.addr %s427, 4
          %s429 = scalar_lea.vmem %s5, %s428
        $region40: #{tpu_custom_call.1} parent=19 // pred_fallthru
          _
        // Predicated region
        $region41: #{tpu_custom_call.1} parent=19 // pred_check
          %p430 = pneg %p191
        $region42: #{tpu_custom_call.1} parent=19 // pred_check_branch
          %432 = sbr.rel (%p430) target = $region44
        $region43: #{tpu_custom_call.1} parent=19 // pred_region
          %p433 = scmp.lt.s32.totalorder %s20, 1
          %s434 = scalar_select %p433, %s20, 1
          %s435 = scalar_lea.vmem %s6, %s434
        $region44: #{tpu_custom_call.1} parent=19 // pred_fallthru
          _
        // Predicated region
        $region45: #{tpu_custom_call.1} parent=19 // pred_check
          %p436 = pneg %p217
        $region46: #{tpu_custom_call.1} parent=19 // pred_check_branch
          %438 = sbr.rel (%p436) target = $region48
        $region47: #{tpu_custom_call.1} parent=19 // pred_region
          %p439 = scmp.lt.s32.totalorder %s20, 1
          %s440 = scalar_select %p439, %s20, 1
          %s441 = scalar_lea.vmem %s7, %s440
        $region48: #{tpu_custom_call.1} parent=19 // pred_fallthru
          _
        // Predicated region
        $region49: #{tpu_custom_call.1} parent=19 // pred_check
          %p442 = pneg %p243
        $region50: #{tpu_custom_call.1} parent=19 // pred_check_branch
          %444 = sbr.rel (%p442) target = $region52
        $region51: #{tpu_custom_call.1} parent=19 // pred_region
          %p445 = scmp.lt.s32.totalorder %s20, 1
          %s446 = scalar_select %p445, %s20, 1
          %s447 = scalar_lea.vmem %s8, %s446
        $region52: #{tpu_custom_call.1} parent=19 // pred_fallthru
          _
        // Predicated region
        $region53: #{tpu_custom_call.1} parent=19 // pred_check
          %p448 = pneg %p269
        $region54: #{tpu_custom_call.1} parent=19 // pred_check_branch
          %450 = sbr.rel (%p448) target = $region56
        $region55: #{tpu_custom_call.1} parent=19 // pred_region
          %p451 = scmp.lt.s32.totalorder %s20, 1
          %s452 = scalar_select %p451, %s20, 1
          %s453 = smul.addr %s452, 4
          %s454 = smul.addr %s453, 4
          %s455 = scalar_lea.vmem %s9, %s454
        $region56: #{tpu_custom_call.1} parent=19 // pred_fallthru
          _
        // Predicated region
        $region57: #{tpu_custom_call.1} parent=19 // pred_check
          %p456 = pneg %p295
        $region58: #{tpu_custom_call.1} parent=19 // pred_check_branch
          %458 = sbr.rel (%p456) target = $region60
        $region59: #{tpu_custom_call.1} parent=19 // pred_region
          %p459 = scmp.lt.s32.totalorder %s20, 1
          %s460 = scalar_select %p459, %s20, 1
          %s461 = scalar_lea.vmem %s10, %s460
        $region60: #{tpu_custom_call.1} parent=19 // pred_fallthru
          _
        // Predicated region
        $region61: #{tpu_custom_call.1} parent=19 // pred_check
          %p462 = pneg %p321
        $region62: #{tpu_custom_call.1} parent=19 // pred_check_branch
          %464 = sbr.rel (%p462) target = $region64
        $region63: #{tpu_custom_call.1} parent=19 // pred_region
          %p465 = scmp.lt.s32.totalorder %s20, 1
          %s466 = scalar_select %p465, %s20, 1
          %s467 = smul.addr %s466, 16
          %s468 = smul.addr %s467, 4
          %s469 = scalar_lea.vmem %s11, %s468
        $region64: #{tpu_custom_call.1} parent=19 // pred_fallthru
          _
        // Predicated region
        $region65: #{tpu_custom_call.1} parent=19 // pred_check
          %p470 = pneg %p347
        $region66: #{tpu_custom_call.1} parent=19 // pred_check_branch
          %472 = sbr.rel (%p470) target = $region68
        $region67: #{tpu_custom_call.1} parent=19 // pred_region
          %p473 = scmp.lt.s32.totalorder %s20, 1
          %s474 = scalar_select %p473, %s20, 1
          %s475 = scalar_lea.vmem %s12, %s474
        $region68: #{tpu_custom_call.1} parent=19 // pred_fallthru
          _
      $region20: #{tpu_custom_call.1} parent=5 // pred_fallthru
        _
      %p476 = scmp.le.s32.totalorder 1, %s20
      %p477 = scmp.lt.s32.totalorder %s20, 3
      %p478 = pnand %p476, %p477
      %p479 = pneg %p478
      // Predicated region
      $region69: #{tpu_custom_call.1} parent=5 // pred_check
        _
      $region70: #{tpu_custom_call.1} parent=5 // pred_check_branch
        %481 = sbr.rel (%p478) target = $region72
      $region71: #{tpu_custom_call.1} parent=5 // pred_region
        %s482 = ssub.s32 %s20, 1
        %p483 = pneg %p41
        %p484 = pneg %p38
        %p485 = scmp.lt.s32.totalorder %s25, 1
        %s486 = scalar_select %p485, %s25, 1
        %s487 = scalar_lea.vmem %s1, %s486
        %p488 = pneg %p67
        %p489 = pneg %p64
        %p490 = scmp.lt.s32.totalorder %s25, 1
        %s491 = scalar_select %p490, %s25, 1
        %s492 = scalar_lea.vmem %s2, %s491
        %p493 = pneg %p93
        %p494 = pneg %p90
        %p495 = scmp.lt.s32.totalorder %s25, 1
        %s496 = scalar_select %p495, %s25, 1
        %s497 = smul.addr %s496, 4
        %s498 = smul.addr %s497, 4
        %s499 = scalar_lea.vmem %s3, %s498
        %p500 = pneg %p119
        %p501 = pneg %p116
        %p502 = scmp.lt.s32.totalorder %s25, 1
        %s503 = scalar_select %p502, %s25, 1
        %s504 = scalar_lea.vmem %s4, %s503
        %p505 = pneg %p145
        %p506 = pneg %p142
        %p507 = scmp.lt.s32.totalorder %s25, 1
        %s508 = scalar_select %p507, %s25, 1
        %s509 = smul.addr %s508, 4
        %s510 = smul.addr %s509, 4
        %s511 = scalar_lea.vmem %s5, %s510
        %p512 = pneg %p171
        %p513 = pneg %p168
        %p514 = scmp.lt.s32.totalorder %s25, 1
        %s515 = scalar_select %p514, %s25, 1
        %s516 = scalar_lea.vmem %s6, %s515
        %p517 = pneg %p197
        %p518 = pneg %p194
        %p519 = scmp.lt.s32.totalorder %s25, 1
        %s520 = scalar_select %p519, %s25, 1
        %s521 = scalar_lea.vmem %s7, %s520
        %p522 = pneg %p223
        %p523 = pneg %p220
        %p524 = scmp.lt.s32.totalorder %s25, 1
        %s525 = scalar_select %p524, %s25, 1
        %s526 = scalar_lea.vmem %s8, %s525
        %p527 = pneg %p249
        %p528 = pneg %p246
        %p529 = scmp.lt.s32.totalorder %s25, 1
        %s530 = scalar_select %p529, %s25, 1
        %s531 = smul.addr %s530, 4
        %s532 = smul.addr %s531, 4
        %s533 = scalar_lea.vmem %s9, %s532
        %p534 = pneg %p275
        %p535 = pneg %p272
        %p536 = scmp.lt.s32.totalorder %s25, 1
        %s537 = scalar_select %p536, %s25, 1
        %s538 = scalar_lea.vmem %s10, %s537
        %p539 = pneg %p301
        %p540 = pneg %p298
        %p541 = scmp.lt.s32.totalorder %s25, 1
        %s542 = scalar_select %p541, %s25, 1
        %s543 = smul.addr %s542, 16
        %s544 = smul.addr %s543, 4
        %s545 = scalar_lea.vmem %s11, %s544
        %p546 = pneg %p327
        %p547 = pneg %p324
        %p548 = scmp.lt.s32.totalorder %s25, 1
        %s549 = scalar_select %p548, %s25, 1
        %s550 = scalar_lea.vmem %s12, %s549
        %p551 = pneg %p353
        %p552 = pneg %p350
        %p553 = pneg %p374
        %p554 = pneg %p371
        %p555 = scmp.lt.s32.totalorder %s25, 1
        %s556 = scalar_select %p555, %s25, 1
        %s557 = scalar_lea.vmem %s1, %s556
        %p558 = scmp.lt.s32.totalorder %s25, 1
        %s559 = scalar_select %p558, %s25, 1
        %s560 = scalar_lea.vmem %s2, %s559
        %p561 = scmp.lt.s32.totalorder %s25, 1
        %s562 = scalar_select %p561, %s25, 1
        %s563 = smul.addr %s562, 4
        %s564 = smul.addr %s563, 4
        %s565 = scalar_lea.vmem %s3, %s564
        %p566 = scmp.lt.s32.totalorder %s25, 1
        %s567 = scalar_select %p566, %s25, 1
        %s568 = scalar_lea.vmem %s4, %s567
        %p569 = scmp.lt.s32.totalorder %s25, 1
        %s570 = scalar_select %p569, %s25, 1
        %s571 = smul.addr %s570, 4
        %s572 = smul.addr %s571, 4
        %s573 = scalar_lea.vmem %s5, %s572
        %p574 = scmp.lt.s32.totalorder %s25, 1
        %s575 = scalar_select %p574, %s25, 1
        %s576 = scalar_lea.vmem %s6, %s575
        %p577 = scmp.lt.s32.totalorder %s25, 1
        %s578 = scalar_select %p577, %s25, 1
        %s579 = scalar_lea.vmem %s7, %s578
        %p580 = scmp.lt.s32.totalorder %s25, 1
        %s581 = scalar_select %p580, %s25, 1
        %s582 = scalar_lea.vmem %s8, %s581
        %p583 = scmp.lt.s32.totalorder %s25, 1
        %s584 = scalar_select %p583, %s25, 1
        %s585 = smul.addr %s584, 4
        %s586 = smul.addr %s585, 4
        %s587 = scalar_lea.vmem %s9, %s586
        %p588 = scmp.lt.s32.totalorder %s25, 1
        %s589 = scalar_select %p588, %s25, 1
        %s590 = scalar_lea.vmem %s10, %s589
        %p591 = scmp.lt.s32.totalorder %s25, 1
        %s592 = scalar_select %p591, %s25, 1
        %s593 = smul.addr %s592, 16
        %s594 = smul.addr %s593, 4
        %s595 = scalar_lea.vmem %s11, %s594
        %p596 = scmp.lt.s32.totalorder %s25, 1
        %s597 = scalar_select %p596, %s25, 1
        %s598 = scalar_lea.vmem %s12, %s597
        %p600 = scmp.eq.s32.totalorder %s25, 0
        // Predicated region
        $region73: #{tpu_custom_call.1} parent=71 // pred_check
          %p601 = pneg %p600
        $region74: #{tpu_custom_call.1} parent=71 // pred_check_branch
          %603 = sbr.rel (%p601) target = $region76
        $region75: #{tpu_custom_call.1} parent=71 // pred_region
          %v604 = vld [vmem:[%s0] sm:$0xff]
          %v605 = vld [vmem:[%s0 + $0x8] sm:$0xf]
          %vm606 = vcmask 261120
          %607 = vst.msk [vmem:[#allocation2] sm:$0xff] %vm606, %v604
          %vm608 = vcmask 257024
          %609 = vst.msk [vmem:[#allocation2 + $0x8] sm:$0xf] %vm608, %v605
        $region76: #{tpu_custom_call.1} parent=71 // pred_fallthru
          _
        %v610 = vld [vmem:[#allocation2] sm:$0xff]
        %v611 = vld [vmem:[#allocation2 + $0x8] sm:$0xf]
        %v612 = vld [vmem:[%s557] sm:$0x1]
        %v613 = vld [vmem:[%s560] sm:$0x1]
        %vm614 = vcmask 261120
        %v615 = vsel %vm614, %v610, 0.0
        %616 = vadd.xlane.f32.xlu0 %v615
        %v617 = vpop.xlane.xlu0 %616
        %vm618 = vcmask 257024
        %v619 = vsel %vm618, %v611, 0.0
        %620 = vadd.xlane.f32.xlu0 %v619
        %v621 = vpop.xlane.xlu0 %620
        %v622 = vrcp.pop 32.0
        %v623 = vmul.f32 32.0, %v622
        %v624 = vsub.f32 1.0, %v623
        %v625 = vmul.f32 %v622, %v624
        %v626 = vadd.f32 %v622, %v625
        %vm627 = vweird.f32 %v622
        %v628 = vsel %vm627, %v622, %v626
        %v629 = vmul.f32 %v617, %v628
        %v630 = vmul.f32 %v621, %v628
        %v631 = vsub.f32 %v610, %v629
        %v632 = vsub.f32 %v611, %v630
        %v633 = vmul.f32 %v631, %v631
        %v634 = vmul.f32 %v632, %v632
        %v635 = vsel %vm614, %v633, 0.0
        %636 = vadd.xlane.f32.xlu0 %v635
        %v637 = vpop.xlane.xlu0 %636
        %v638 = vsel %vm618, %v634, 0.0
        %639 = vadd.xlane.f32.xlu0 %v638
        %v640 = vpop.xlane.xlu0 %639
        %v641 = vmul.f32 %v637, %v628
        %v642 = vmul.f32 %v640, %v628
        %v643 = vadd.f32 %v641, 1e-05
        %v644 = vadd.f32 %v642, 1e-05
        %v645 = vrsqrt.pop %v643
        %v646 = vmul.f32 %v645, %v643
        %v647 = vmul.f32 %v646, %v645
        %v648 = vmul.f32 0.5, %v647
        %v649 = vsub.f32 1.5, %v648
        %v650 = vmul.f32 %v645, %v649
        %vm651 = vweird.f32 %v643
        %vm652 = vweird.f32 %v645
        %vm653 = vmor %vm651, %vm652
        %v654 = vsel %vm653, %v645, %v650
        %v655 = vrsqrt.pop %v644
        %v656 = vmul.f32 %v655, %v644
        %v657 = vmul.f32 %v656, %v655
        %v658 = vmul.f32 0.5, %v657
        %v659 = vsub.f32 1.5, %v658
        %v660 = vmul.f32 %v655, %v659
        %vm661 = vweird.f32 %v644
        %vm662 = vweird.f32 %v655
        %vm663 = vmor %vm661, %vm662
        %v664 = vsel %vm663, %v655, %v660
        %v665 = vmul.f32 %v631, %v654
        %v666 = vmul.f32 %v632, %v664
        %v668 = vperm.slane %v612, 0
        %v670 = vmul.f32 %v665, %v668
        %v671 = vmul.f32 %v666, %v668
        %v673 = vperm.slane %v613, 0
        %v675 = vadd.f32 %v670, %v673
        %v676 = vadd.f32 %v671, %v673
        %v677 = vpack.c.bf16 %v676, %v675
        %v678 = vld [vmem:[%s565] sm:$0xf]
        %v679 = vld [vmem:[%s565 + $0x4] sm:$0xf]
        %v680 = vld [vmem:[%s565 + $0x8] sm:$0xf]
        %v681 = vld [vmem:[%s565 + $0xc] sm:$0xf]
        %v682 = vld [vmem:[%s568] sm:$0x1]
        %v684 = vperm.slane %v682, 0
        %v690 = vunpack.c.l.b16 %v678
        %v691 = vunpack.c.l.b16 %v679
        %v692 = vunpack.c.l.b16 %v680
        %v693 = vunpack.c.l.b16 %v681
        %v694 = vpack.c.b16 %v691, %v690
        %v695 = vpack.c.b16 %v693, %v692
        %v699 = vsel %vm614, %v677, 0
        %701 = vmatpush.bf16.msra.mxu0 0
        %702 = vmatpush.bf16.msra.mxu0 0
        %703 = vmatpush.bf16.msra.mxu0 0
        %704 = vmatpush.bf16.msra.mxu0 0
        %705 = vmatpush.bf16.msra.mxu0 0
        %706 = vmatpush.bf16.msra.mxu0 0
        %707 = vmatpush.bf16.msra.mxu0 %v695
        %708 = vmatpush.bf16.msra.mxu0 %v694
        %709 = vmatmul.bf16.gmra.mxu0 %v699
        %v710 = vpop.f32.mrf.mxu0
        %v711 = vadd.f32 %v684, %v710
        %v712 = vpop.f32.mrf.mxu0
        %v713 = vadd.f32 %v684, %v712
        %714 = vdwg.mxu0
        %v715 = vmul.f32 %v711, 0.35355338
        %v716 = vmul.f32 %v713, 0.35355338
        %v717 = vpack.c.bf16 %v715, %v715
        %v718 = vpack.c.bf16 %v711, %v711
        %720 = vrot.lane.b32.xlu0 %v718, 96
        %v721 = vpop.permute.xlu0 %720
        %vm722 = vcmask 64512
        %v724 = vsel %vm722, %v717, 0
        %v727 = vsel %vm722, %v721, 0
        %729 = vmatpush.bf16.xpose.msra.mxu0 0
        %730 = vmatpush.bf16.xpose.msra.mxu0 0
        %731 = vmatpush.bf16.xpose.msra.mxu0 0
        %732 = vmatpush.bf16.xpose.msra.mxu0 0
        %733 = vmatpush.bf16.xpose.msra.mxu0 0
        %734 = vmatpush.bf16.xpose.msra.mxu0 0
        %735 = vmatpush.bf16.xpose.msra.mxu0 0
        %736 = vmatpush.bf16.xpose.msra.mxu0 %v727
        %737 = vmatmul.bf16.gmra.mxu0 %v724
        %v738 = vpop.f32.mrf.mxu0
        %v739 = vadd.f32 0.0, %v738
        %v740 = vpop.f32.mrf.mxu0
        %741 = vdwg.mxu0
        %vm742 = vcmask 46080
        %v743 = vsel %vm742, %v739, -inf
        %744 = vmax.xlane.f32.xlu0 %v743
        %v745 = vpop.xlane.xlu0 %744
        %v746 = vsub.f32 %v739, %v745
        %v747 = vmul.f32 %v746, 1.442695
        %v748 = vpow.pop %v747
        %v749 = vsel %vm742, %v748, 0.0
        %750 = vadd.xlane.f32.xlu0 %v749
        %v751 = vpop.xlane.xlu0 %750
        %v752 = vrcp.pop %v751
        %v753 = vmul.f32 %v748, %v752
        %v754 = vpack.c.bf16 %v753, %v753
        %755 = vrot.lane.b32.xlu0 %v718, 64
        %v756 = vpop.permute.xlu0 %755
        %vm757 = vcmask 48128
        %v759 = vsel %vm757, %v754, 0
        %vm761 = vcmask 1042432
        %v763 = vsel %vm761, %v756, 0
        %765 = vmatpush.bf16.msra.mxu0 0
        %766 = vmatpush.bf16.msra.mxu0 0
        %767 = vmatpush.bf16.msra.mxu0 0
        %768 = vmatpush.bf16.msra.mxu0 0
        %769 = vmatpush.bf16.msra.mxu0 0
        %770 = vmatpush.bf16.msra.mxu0 0
        %771 = vmatpush.bf16.msra.mxu0 0
        %772 = vmatpush.bf16.msra.mxu0 %v763
        %773 = vmatmul.bf16.gmra.mxu0 %v759
        %v774 = vpop.f32.mrf.mxu0
        %v775 = vadd.f32 0.0, %v774
        %v776 = vpop.f32.mrf.mxu0
        %777 = vdwg.mxu0
        %vm778 = vcmask 62464
        %779 = vst.msk [vmem:[#allocation3] sm:$0x3f] %vm778, %v775
        %781 = vrot.lane.b32.xlu0 %v717, 120
        %v782 = vpop.permute.xlu0 %781
        %783 = vrot.lane.b32.xlu0 %v718, 88
        %v784 = vpop.permute.xlu0 %783
        %v786 = vsel %vm722, %v782, 0
        %v789 = vsel %vm722, %v784, 0
        %791 = vmatpush.bf16.xpose.msra.mxu0 0
        %792 = vmatpush.bf16.xpose.msra.mxu0 0
        %793 = vmatpush.bf16.xpose.msra.mxu0 0
        %794 = vmatpush.bf16.xpose.msra.mxu0 0
        %795 = vmatpush.bf16.xpose.msra.mxu0 0
        %796 = vmatpush.bf16.xpose.msra.mxu0 0
        %797 = vmatpush.bf16.xpose.msra.mxu0 0
        %798 = vmatpush.bf16.xpose.msra.mxu0 %v789
        %799 = vmatmul.bf16.gmra.mxu0 %v786
        %v800 = vpop.f32.mrf.mxu0
        %v801 = vadd.f32 0.0, %v800
        %v802 = vpop.f32.mrf.mxu0
        %803 = vdwg.mxu0
        %v804 = vsel %vm742, %v801, -inf
        %805 = vmax.xlane.f32.xlu0 %v804
        %v806 = vpop.xlane.xlu0 %805
        %v807 = vsub.f32 %v801, %v806
        %v808 = vmul.f32 %v807, 1.442695
        %v809 = vpow.pop %v808
        %v810 = vsel %vm742, %v809, 0.0
        %811 = vadd.xlane.f32.xlu0 %v810
        %v812 = vpop.xlane.xlu0 %811
        %v813 = vrcp.pop %v812
        %v814 = vmul.f32 %v809, %v813
        %v815 = vpack.c.bf16 %v814, %v814
        %816 = vrot.lane.b32.xlu0 %v718, 56
        %v817 = vpop.permute.xlu0 %816
        %v819 = vsel %vm757, %v815, 0
        %v822 = vsel %vm761, %v817, 0
        %824 = vmatpush.bf16.msra.mxu0 0
        %825 = vmatpush.bf16.msra.mxu0 0
        %826 = vmatpush.bf16.msra.mxu0 0
        %827 = vmatpush.bf16.msra.mxu0 0
        %828 = vmatpush.bf16.msra.mxu0 0
        %829 = vmatpush.bf16.msra.mxu0 0
        %830 = vmatpush.bf16.msra.mxu0 0
        %831 = vmatpush.bf16.msra.mxu0 %v822
        %832 = vmatmul.bf16.gmra.mxu0 %v819
        %v833 = vpop.f32.mrf.mxu0
        %v834 = vadd.f32 0.0, %v833
        %v835 = vpop.f32.mrf.mxu0
        %836 = vdwg.mxu0
        %838 = vrot.lane.b32.xlu0 %v834, 8
        %v839 = vpop.permute.xlu0 %838
        %vm841 = vcmask 128064
        %842 = vst.msk [vmem:[#allocation3] sm:$0x3f] %vm841, %v839
        %843 = vrot.lane.b32.xlu0 %v717, 112
        %v844 = vpop.permute.xlu0 %843
        %845 = vrot.lane.b32.xlu0 %v718, 80
        %v846 = vpop.permute.xlu0 %845
        %v848 = vsel %vm722, %v844, 0
        %v851 = vsel %vm722, %v846, 0
        %853 = vmatpush.bf16.xpose.msra.mxu0 0
        %854 = vmatpush.bf16.xpose.msra.mxu0 0
        %855 = vmatpush.bf16.xpose.msra.mxu0 0
        %856 = vmatpush.bf16.xpose.msra.mxu0 0
        %857 = vmatpush.bf16.xpose.msra.mxu0 0
        %858 = vmatpush.bf16.xpose.msra.mxu0 0
        %859 = vmatpush.bf16.xpose.msra.mxu0 0
        %860 = vmatpush.bf16.xpose.msra.mxu0 %v851
        %861 = vmatmul.bf16.gmra.mxu0 %v848
        %v862 = vpop.f32.mrf.mxu0
        %v863 = vadd.f32 0.0, %v862
        %v864 = vpop.f32.mrf.mxu0
        %865 = vdwg.mxu0
        %v866 = vsel %vm742, %v863, -inf
        %867 = vmax.xlane.f32.xlu0 %v866
        %v868 = vpop.xlane.xlu0 %867
        %v869 = vsub.f32 %v863, %v868
        %v870 = vmul.f32 %v869, 1.442695
        %v871 = vpow.pop %v870
        %v872 = vsel %vm742, %v871, 0.0
        %873 = vadd.xlane.f32.xlu0 %v872
        %v874 = vpop.xlane.xlu0 %873
        %v875 = vrcp.pop %v874
        %v876 = vmul.f32 %v871, %v875
        %v877 = vpack.c.bf16 %v876, %v876
        %878 = vrot.lane.b32.xlu0 %v718, 48
        %v879 = vpop.permute.xlu0 %878
        %v881 = vsel %vm757, %v877, 0
        %v884 = vsel %vm761, %v879, 0
        %886 = vmatpush.bf16.msra.mxu0 0
        %887 = vmatpush.bf16.msra.mxu0 0
        %888 = vmatpush.bf16.msra.mxu0 0
        %889 = vmatpush.bf16.msra.mxu0 0
        %890 = vmatpush.bf16.msra.mxu0 0
        %891 = vmatpush.bf16.msra.mxu0 0
        %892 = vmatpush.bf16.msra.mxu0 0
        %893 = vmatpush.bf16.msra.mxu0 %v884
        %894 = vmatmul.bf16.gmra.mxu0 %v881
        %v895 = vpop.f32.mrf.mxu0
        %v896 = vadd.f32 0.0, %v895
        %v897 = vpop.f32.mrf.mxu0
        %898 = vdwg.mxu0
        %900 = vrot.lane.b32.xlu0 %v896, 16
        %v901 = vpop.permute.xlu0 %900
        %vm903 = vcmask 193664
        %904 = vst.msk [vmem:[#allocation3] sm:$0x3f] %vm903, %v901
        %905 = vrot.lane.b32.xlu0 %v717, 104
        %v906 = vpop.permute.xlu0 %905
        %907 = vrot.lane.b32.xlu0 %v718, 72
        %v908 = vpop.permute.xlu0 %907
        %v910 = vsel %vm722, %v906, 0
        %v913 = vsel %vm722, %v908, 0
        %915 = vmatpush.bf16.xpose.msra.mxu0 0
        %916 = vmatpush.bf16.xpose.msra.mxu0 0
        %917 = vmatpush.bf16.xpose.msra.mxu0 0
        %918 = vmatpush.bf16.xpose.msra.mxu0 0
        %919 = vmatpush.bf16.xpose.msra.mxu0 0
        %920 = vmatpush.bf16.xpose.msra.mxu0 0
        %921 = vmatpush.bf16.xpose.msra.mxu0 0
        %922 = vmatpush.bf16.xpose.msra.mxu0 %v913
        %923 = vmatmul.bf16.gmra.mxu0 %v910
        %v924 = vpop.f32.mrf.mxu0
        %v925 = vadd.f32 0.0, %v924
        %v926 = vpop.f32.mrf.mxu0
        %927 = vdwg.mxu0
        %v928 = vsel %vm742, %v925, -inf
        %929 = vmax.xlane.f32.xlu0 %v928
        %v930 = vpop.xlane.xlu0 %929
        %v931 = vsub.f32 %v925, %v930
        %v932 = vmul.f32 %v931, 1.442695
        %v933 = vpow.pop %v932
        %v934 = vsel %vm742, %v933, 0.0
        %935 = vadd.xlane.f32.xlu0 %v934
        %v936 = vpop.xlane.xlu0 %935
        %v937 = vrcp.pop %v936
        %v938 = vmul.f32 %v933, %v937
        %v939 = vpack.c.bf16 %v938, %v938
        %940 = vrot.lane.b32.xlu0 %v718, 40
        %v941 = vpop.permute.xlu0 %940
        %v943 = vsel %vm757, %v939, 0
        %v946 = vsel %vm761, %v941, 0
        %948 = vmatpush.bf16.msra.mxu0 0
        %949 = vmatpush.bf16.msra.mxu0 0
        %950 = vmatpush.bf16.msra.mxu0 0
        %951 = vmatpush.bf16.msra.mxu0 0
        %952 = vmatpush.bf16.msra.mxu0 0
        %953 = vmatpush.bf16.msra.mxu0 0
        %954 = vmatpush.bf16.msra.mxu0 0
        %955 = vmatpush.bf16.msra.mxu0 %v946
        %956 = vmatmul.bf16.gmra.mxu0 %v943
        %v957 = vpop.f32.mrf.mxu0
        %v958 = vadd.f32 0.0, %v957
        %v959 = vpop.f32.mrf.mxu0
        %960 = vdwg.mxu0
        %962 = vrot.lane.b32.xlu0 %v958, 24
        %v963 = vpop.permute.xlu0 %962
        %vm965 = vcmask 259264
        %966 = vst.msk [vmem:[#allocation3] sm:$0x3f] %vm965, %v963
        %v967 = vpack.c.bf16 %v716, %v715
        %v968 = vpack.c.bf16 %v713, %v711
        %v970 = vrot.slane %v967, 3
        %v972 = vrot.slane %v968, 3
        %973 = vrot.lane.b32.xlu0 %v972, 96
        %v974 = vpop.permute.xlu0 %973
        %v976 = vsel %vm722, %v970, 0
        %v979 = vsel %vm722, %v974, 0
        %981 = vmatpush.bf16.xpose.msra.mxu0 0
        %982 = vmatpush.bf16.xpose.msra.mxu0 0
        %983 = vmatpush.bf16.xpose.msra.mxu0 0
        %984 = vmatpush.bf16.xpose.msra.mxu0 0
        %985 = vmatpush.bf16.xpose.msra.mxu0 0
        %986 = vmatpush.bf16.xpose.msra.mxu0 0
        %987 = vmatpush.bf16.xpose.msra.mxu0 0
        %988 = vmatpush.bf16.xpose.msra.mxu0 %v979
        %989 = vmatmul.bf16.gmra.mxu0 %v976
        %v990 = vpop.f32.mrf.mxu0
        %v991 = vadd.f32 0.0, %v990
        %v992 = vpop.f32.mrf.mxu0
        %993 = vdwg.mxu0
        %v994 = vsel %vm742, %v991, -inf
        %995 = vmax.xlane.f32.xlu0 %v994
        %v996 = vpop.xlane.xlu0 %995
        %v997 = vsub.f32 %v991, %v996
        %v998 = vmul.f32 %v997, 1.442695
        %v999 = vpow.pop %v998
        %v1000 = vsel %vm742, %v999, 0.0
        %1001 = vadd.xlane.f32.xlu0 %v1000
        %v1002 = vpop.xlane.xlu0 %1001
        %v1003 = vrcp.pop %v1002
        %v1004 = vmul.f32 %v999, %v1003
        %v1005 = vpack.c.bf16 %v1004, %v1004
        %1006 = vrot.lane.b32.xlu0 %v972, 64
        %v1007 = vpop.permute.xlu0 %1006
        %v1009 = vsel %vm757, %v1005, 0
        %v1012 = vsel %vm761, %v1007, 0
        %1014 = vmatpush.bf16.msra.mxu0 0
        %1015 = vmatpush.bf16.msra.mxu0 0
        %1016 = vmatpush.bf16.msra.mxu0 0
        %1017 = vmatpush.bf16.msra.mxu0 0
        %1018 = vmatpush.bf16.msra.mxu0 0
        %1019 = vmatpush.bf16.msra.mxu0 0
        %1020 = vmatpush.bf16.msra.mxu0 0
        %1021 = vmatpush.bf16.msra.mxu0 %v1012
        %1022 = vmatmul.bf16.gmra.mxu0 %v1009
        %v1023 = vpop.f32.mrf.mxu0
        %v1024 = vadd.f32 0.0, %v1023
        %v1025 = vpop.f32.mrf.mxu0
        %1026 = vdwg.mxu0
        %1027 = vst.msk [vmem:[#allocation3 + $0x6] sm:$0x3f] %vm778, %v1024
        %1028 = vrot.lane.b32.xlu0 %v970, 120
        %v1029 = vpop.permute.xlu0 %1028
        %1030 = vrot.lane.b32.xlu0 %v972, 88
        %v1031 = vpop.permute.xlu0 %1030
        %v1033 = vsel %vm722, %v1029, 0
        %v1036 = vsel %vm722, %v1031, 0
        %1038 = vmatpush.bf16.xpose.msra.mxu0 0
        %1039 = vmatpush.bf16.xpose.msra.mxu0 0
        %1040 = vmatpush.bf16.xpose.msra.mxu0 0
        %1041 = vmatpush.bf16.xpose.msra.mxu0 0
        %1042 = vmatpush.bf16.xpose.msra.mxu0 0
        %1043 = vmatpush.bf16.xpose.msra.mxu0 0
        %1044 = vmatpush.bf16.xpose.msra.mxu0 0
        %1045 = vmatpush.bf16.xpose.msra.mxu0 %v1036
        %1046 = vmatmul.bf16.gmra.mxu0 %v1033
        %v1047 = vpop.f32.mrf.mxu0
        %v1048 = vadd.f32 0.0, %v1047
        %v1049 = vpop.f32.mrf.mxu0
        %1050 = vdwg.mxu0
        %v1051 = vsel %vm742, %v1048, -inf
        %1052 = vmax.xlane.f32.xlu0 %v1051
        %v1053 = vpop.xlane.xlu0 %1052
        %v1054 = vsub.f32 %v1048, %v1053
        %v1055 = vmul.f32 %v1054, 1.442695
        %v1056 = vpow.pop %v1055
        %v1057 = vsel %vm742, %v1056, 0.0
        %1058 = vadd.xlane.f32.xlu0 %v1057
        %v1059 = vpop.xlane.xlu0 %1058
        %v1060 = vrcp.pop %v1059
        %v1061 = vmul.f32 %v1056, %v1060
        %v1062 = vpack.c.bf16 %v1061, %v1061
        %1063 = vrot.lane.b32.xlu0 %v972, 56
        %v1064 = vpop.permute.xlu0 %1063
        %v1066 = vsel %vm757, %v1062, 0
        %v1069 = vsel %vm761, %v1064, 0
        %1071 = vmatpush.bf16.msra.mxu0 0
        %1072 = vmatpush.bf16.msra.mxu0 0
        %1073 = vmatpush.bf16.msra.mxu0 0
        %1074 = vmatpush.bf16.msra.mxu0 0
        %1075 = vmatpush.bf16.msra.mxu0 0
        %1076 = vmatpush.bf16.msra.mxu0 0
        %1077 = vmatpush.bf16.msra.mxu0 0
        %1078 = vmatpush.bf16.msra.mxu0 %v1069
        %1079 = vmatmul.bf16.gmra.mxu0 %v1066
        %v1080 = vpop.f32.mrf.mxu0
        %v1081 = vadd.f32 0.0, %v1080
        %v1082 = vpop.f32.mrf.mxu0
        %1083 = vdwg.mxu0
        %1085 = vrot.lane.b32.xlu0 %v1081, 8
        %v1086 = vpop.permute.xlu0 %1085
        %1088 = vst.msk [vmem:[#allocation3 + $0x6] sm:$0x3f] %vm841, %v1086
        %1089 = vrot.lane.b32.xlu0 %v970, 112
        %v1090 = vpop.permute.xlu0 %1089
        %1091 = vrot.lane.b32.xlu0 %v972, 80
        %v1092 = vpop.permute.xlu0 %1091
        %v1094 = vsel %vm722, %v1090, 0
        %v1097 = vsel %vm722, %v1092, 0
        %1099 = vmatpush.bf16.xpose.msra.mxu0 0
        %1100 = vmatpush.bf16.xpose.msra.mxu0 0
        %1101 = vmatpush.bf16.xpose.msra.mxu0 0
        %1102 = vmatpush.bf16.xpose.msra.mxu0 0
        %1103 = vmatpush.bf16.xpose.msra.mxu0 0
        %1104 = vmatpush.bf16.xpose.msra.mxu0 0
        %1105 = vmatpush.bf16.xpose.msra.mxu0 0
        %1106 = vmatpush.bf16.xpose.msra.mxu0 %v1097
        %1107 = vmatmul.bf16.gmra.mxu0 %v1094
        %v1108 = vpop.f32.mrf.mxu0
        %v1109 = vadd.f32 0.0, %v1108
        %v1110 = vpop.f32.mrf.mxu0
        %1111 = vdwg.mxu0
        %v1112 = vsel %vm742, %v1109, -inf
        %1113 = vmax.xlane.f32.xlu0 %v1112
        %v1114 = vpop.xlane.xlu0 %1113
        %v1115 = vsub.f32 %v1109, %v1114
        %v1116 = vmul.f32 %v1115, 1.442695
        %v1117 = vpow.pop %v1116
        %v1118 = vsel %vm742, %v1117, 0.0
        %1119 = vadd.xlane.f32.xlu0 %v1118
        %v1120 = vpop.xlane.xlu0 %1119
        %v1121 = vrcp.pop %v1120
        %v1122 = vmul.f32 %v1117, %v1121
        %v1123 = vpack.c.bf16 %v1122, %v1122
        %1124 = vrot.lane.b32.xlu0 %v972, 48
        %v1125 = vpop.permute.xlu0 %1124
        %v1127 = vsel %vm757, %v1123, 0
        %v1130 = vsel %vm761, %v1125, 0
        %1132 = vmatpush.bf16.msra.mxu0 0
        %1133 = vmatpush.bf16.msra.mxu0 0
        %1134 = vmatpush.bf16.msra.mxu0 0
        %1135 = vmatpush.bf16.msra.mxu0 0
        %1136 = vmatpush.bf16.msra.mxu0 0
        %1137 = vmatpush.bf16.msra.mxu0 0
        %1138 = vmatpush.bf16.msra.mxu0 0
        %1139 = vmatpush.bf16.msra.mxu0 %v1130
        %1140 = vmatmul.bf16.gmra.mxu0 %v1127
        %v1141 = vpop.f32.mrf.mxu0
        %v1142 = vadd.f32 0.0, %v1141
        %v1143 = vpop.f32.mrf.mxu0
        %1144 = vdwg.mxu0
        %1146 = vrot.lane.b32.xlu0 %v1142, 16
        %v1147 = vpop.permute.xlu0 %1146
        %1149 = vst.msk [vmem:[#allocation3 + $0x6] sm:$0x3f] %vm903, %v1147
        %1150 = vrot.lane.b32.xlu0 %v970, 104
        %v1151 = vpop.permute.xlu0 %1150
        %1152 = vrot.lane.b32.xlu0 %v972, 72
        %v1153 = vpop.permute.xlu0 %1152
        %v1155 = vsel %vm722, %v1151, 0
        %v1158 = vsel %vm722, %v1153, 0
        %1160 = vmatpush.bf16.xpose.msra.mxu0 0
        %1161 = vmatpush.bf16.xpose.msra.mxu0 0
        %1162 = vmatpush.bf16.xpose.msra.mxu0 0
        %1163 = vmatpush.bf16.xpose.msra.mxu0 0
        %1164 = vmatpush.bf16.xpose.msra.mxu0 0
        %1165 = vmatpush.bf16.xpose.msra.mxu0 0
        %1166 = vmatpush.bf16.xpose.msra.mxu0 0
        %1167 = vmatpush.bf16.xpose.msra.mxu0 %v1158
        %1168 = vmatmul.bf16.gmra.mxu0 %v1155
        %v1169 = vpop.f32.mrf.mxu0
        %v1170 = vadd.f32 0.0, %v1169
        %v1171 = vpop.f32.mrf.mxu0
        %1172 = vdwg.mxu0
        %v1173 = vsel %vm742, %v1170, -inf
        %1174 = vmax.xlane.f32.xlu0 %v1173
        %v1175 = vpop.xlane.xlu0 %1174
        %v1176 = vsub.f32 %v1170, %v1175
        %v1177 = vmul.f32 %v1176, 1.442695
        %v1178 = vpow.pop %v1177
        %v1179 = vsel %vm742, %v1178, 0.0
        %1180 = vadd.xlane.f32.xlu0 %v1179
        %v1181 = vpop.xlane.xlu0 %1180
        %v1182 = vrcp.pop %v1181
        %v1183 = vmul.f32 %v1178, %v1182
        %v1184 = vpack.c.bf16 %v1183, %v1183
        %1185 = vrot.lane.b32.xlu0 %v972, 40
        %v1186 = vpop.permute.xlu0 %1185
        %v1188 = vsel %vm757, %v1184, 0
        %v1191 = vsel %vm761, %v1186, 0
        %1193 = vmatpush.bf16.msra.mxu0 0
        %1194 = vmatpush.bf16.msra.mxu0 0
        %1195 = vmatpush.bf16.msra.mxu0 0
        %1196 = vmatpush.bf16.msra.mxu0 0
        %1197 = vmatpush.bf16.msra.mxu0 0
        %1198 = vmatpush.bf16.msra.mxu0 0
        %1199 = vmatpush.bf16.msra.mxu0 0
        %1200 = vmatpush.bf16.msra.mxu0 %v1191
        %1201 = vmatmul.bf16.gmra.mxu0 %v1188
        %v1202 = vpop.f32.mrf.mxu0
        %v1203 = vadd.f32 0.0, %v1202
        %v1204 = vpop.f32.mrf.mxu0
        %1205 = vdwg.mxu0
        %1207 = vrot.lane.b32.xlu0 %v1203, 24
        %v1208 = vpop.permute.xlu0 %1207
        %1210 = vst.msk [vmem:[#allocation3 + $0x6] sm:$0x3f] %vm965, %v1208
        %v1211 = vld [vmem:[#allocation3] sm:$0xff]
        %v1212 = vld [vmem:[#allocation3 + $0x8] sm:$0xf]
        %v1213 = vpack.c.bf16 %v1212, %v1211
        %v1214 = vld [vmem:[%s573] sm:$0xf]
        %v1215 = vld [vmem:[%s573 + $0x4] sm:$0xf]
        %v1216 = vld [vmem:[%s573 + $0x8] sm:$0xf]
        %v1217 = vld [vmem:[%s573 + $0xc] sm:$0xf]
        %v1218 = vld [vmem:[%s576] sm:$0x1]
        %v1220 = vperm.slane %v1218, 0
        %v1226 = vunpack.c.l.b16 %v1214
        %v1227 = vunpack.c.l.b16 %v1215
        %v1228 = vunpack.c.l.b16 %v1216
        %v1229 = vunpack.c.l.b16 %v1217
        %v1230 = vpack.c.b16 %v1227, %v1226
        %v1231 = vpack.c.b16 %v1229, %v1228
        %v1235 = vsel %vm614, %v1213, 0
        %1237 = vmatpush.bf16.msra.mxu0 0
        %1238 = vmatpush.bf16.msra.mxu0 0
        %1239 = vmatpush.bf16.msra.mxu0 0
        %1240 = vmatpush.bf16.msra.mxu0 0
        %1241 = vmatpush.bf16.msra.mxu0 0
        %1242 = vmatpush.bf16.msra.mxu0 0
        %1243 = vmatpush.bf16.msra.mxu0 %v1231
        %1244 = vmatpush.bf16.msra.mxu0 %v1230
        %1245 = vmatmul.bf16.gmra.mxu0 %v1235
        %v1246 = vpop.f32.mrf.mxu0
        %v1247 = vadd.f32 %v1220, %v1246
        %v1248 = vpop.f32.mrf.mxu0
        %v1249 = vadd.f32 %v1220, %v1248
        %1250 = vdwg.mxu0
        %v1251 = vadd.f32 %v610, %v1247
        %v1252 = vadd.f32 %v611, %v1249
        %v1253 = vld [vmem:[%s579] sm:$0x1]
        %v1254 = vld [vmem:[%s582] sm:$0x1]
        %v1255 = vsel %vm614, %v1251, 0.0
        %1256 = vadd.xlane.f32.xlu0 %v1255
        %v1257 = vpop.xlane.xlu0 %1256
        %v1258 = vsel %vm618, %v1252, 0.0
        %1259 = vadd.xlane.f32.xlu0 %v1258
        %v1260 = vpop.xlane.xlu0 %1259
        %v1261 = vmul.f32 %v1257, %v628
        %v1262 = vmul.f32 %v1260, %v628
        %v1263 = vsub.f32 %v1251, %v1261
        %v1264 = vsub.f32 %v1252, %v1262
        %v1265 = vmul.f32 %v1263, %v1263
        %v1266 = vmul.f32 %v1264, %v1264
        %v1267 = vsel %vm614, %v1265, 0.0
        %1268 = vadd.xlane.f32.xlu0 %v1267
        %v1269 = vpop.xlane.xlu0 %1268
        %v1270 = vsel %vm618, %v1266, 0.0
        %1271 = vadd.xlane.f32.xlu0 %v1270
        %v1272 = vpop.xlane.xlu0 %1271
        %v1273 = vmul.f32 %v1269, %v628
        %v1274 = vmul.f32 %v1272, %v628
        %v1275 = vadd.f32 %v1273, 1e-05
        %v1276 = vadd.f32 %v1274, 1e-05
        %v1277 = vrsqrt.pop %v1275
        %v1278 = vmul.f32 %v1277, %v1275
        %v1279 = vmul.f32 %v1278, %v1277
        %v1280 = vmul.f32 0.5, %v1279
        %v1281 = vsub.f32 1.5, %v1280
        %v1282 = vmul.f32 %v1277, %v1281
        %vm1283 = vweird.f32 %v1275
        %vm1284 = vweird.f32 %v1277
        %vm1285 = vmor %vm1283, %vm1284
        %v1286 = vsel %vm1285, %v1277, %v1282
        %v1287 = vrsqrt.pop %v1276
        %v1288 = vmul.f32 %v1287, %v1276
        %v1289 = vmul.f32 %v1288, %v1287
        %v1290 = vmul.f32 0.5, %v1289
        %v1291 = vsub.f32 1.5, %v1290
        %v1292 = vmul.f32 %v1287, %v1291
        %vm1293 = vweird.f32 %v1276
        %vm1294 = vweird.f32 %v1287
        %vm1295 = vmor %vm1293, %vm1294
        %v1296 = vsel %vm1295, %v1287, %v1292
        %v1297 = vmul.f32 %v1263, %v1286
        %v1298 = vmul.f32 %v1264, %v1296
        %v1300 = vperm.slane %v1253, 0
        %v1302 = vmul.f32 %v1297, %v1300
        %v1303 = vmul.f32 %v1298, %v1300
        %v1305 = vperm.slane %v1254, 0
        %v1307 = vadd.f32 %v1302, %v1305
        %v1308 = vadd.f32 %v1303, %v1305
        %v1309 = vpack.c.bf16 %v1308, %v1307
        %v1310 = vld [vmem:[%s587] sm:$0xf]
        %v1311 = vld [vmem:[%s587 + $0x4] sm:$0xf]
        %v1312 = vld [vmem:[%s587 + $0x8] sm:$0xf]
        %v1313 = vld [vmem:[%s587 + $0xc] sm:$0xf]
        %v1314 = vld [vmem:[%s590] sm:$0x1]
        %v1316 = vperm.slane %v1314, 0
        %v1322 = vunpack.c.l.b16 %v1310
        %v1323 = vunpack.c.l.b16 %v1311
        %v1324 = vunpack.c.l.b16 %v1312
        %v1325 = vunpack.c.l.b16 %v1313
        %v1326 = vpack.c.b16 %v1323, %v1322
        %v1327 = vpack.c.b16 %v1325, %v1324
        %v1331 = vsel %vm614, %v1309, 0
        %1333 = vmatpush.bf16.msra.mxu0 0
        %1334 = vmatpush.bf16.msra.mxu0 0
        %1335 = vmatpush.bf16.msra.mxu0 0
        %1336 = vmatpush.bf16.msra.mxu0 0
        %1337 = vmatpush.bf16.msra.mxu0 0
        %1338 = vmatpush.bf16.msra.mxu0 0
        %1339 = vmatpush.bf16.msra.mxu0 %v1327
        %1340 = vmatpush.bf16.msra.mxu0 %v1326
        %1341 = vmatmul.bf16.gmra.mxu0 %v1331
        %v1342 = vpop.f32.mrf.mxu0
        %v1343 = vadd.f32 %v1316, %v1342
        %v1344 = vpop.f32.mrf.mxu0
        %v1345 = vadd.f32 %v1316, %v1344
        %1346 = vdwg.mxu0
        %v1347 = vmul.f32 %v1343, 0.5
        %v1348 = vmul.f32 %v1345, 0.5
        %v1349 = vmul.f32 %v1343, 0.70710677
        %v1350 = vmul.f32 %v1345, 0.70710677
        %vm1351 = vcmp.ge.f32.partialorder %v1349, 0.0
        %vm1352 = vcmp.ge.f32.partialorder %v1350, 0.0
        %v1353 = vsel %vm1351, 1.0, -1.0
        %v1354 = vsel %vm1352, 1.0, -1.0
        %v1355 = vand.u32 2147483647, %v1349
        %v1356 = vand.u32 2147483647, %v1350
        %v1357 = vmul.f32 %v1355, 0.3275911
        %v1358 = vmul.f32 %v1356, 0.3275911
        %v1359 = vadd.f32 %v1357, 1.0
        %v1360 = vadd.f32 %v1358, 1.0
        %v1361 = vrcp.pop %v1359
        %v1362 = vrcp.pop %v1360
        %v1363 = vmul.f32 %v1361, 1.0614054
        %v1364 = vmul.f32 %v1362, 1.0614054
        %v1365 = vadd.f32 %v1363, -1.4531521
        %v1366 = vadd.f32 %v1364, -1.4531521
        %v1367 = vmul.f32 %v1365, %v1361
        %v1368 = vmul.f32 %v1366, %v1362
        %v1369 = vadd.f32 %v1367, 1.4214138
        %v1370 = vadd.f32 %v1368, 1.4214138
        %v1371 = vmul.f32 %v1369, %v1361
        %v1372 = vmul.f32 %v1370, %v1362
        %v1373 = vadd.f32 %v1371, -0.28449672
        %v1374 = vadd.f32 %v1372, -0.28449672
        %v1375 = vmul.f32 %v1373, %v1361
        %v1376 = vmul.f32 %v1374, %v1362
        %v1377 = vadd.f32 %v1375, 0.2548296
        %v1378 = vadd.f32 %v1376, 0.2548296
        %v1379 = vmul.f32 %v1377, %v1361
        %v1380 = vmul.f32 %v1378, %v1362
        %v1381 = vsub.f32 0.0, %v1355
        %v1382 = vsub.f32 0.0, %v1356
        %v1383 = vmul.f32 %v1381, %v1355
        %v1384 = vmul.f32 %v1382, %v1356
        %v1385 = vmul.f32 %v1383, 1.442695
        %v1386 = vpow.pop %v1385
        %v1387 = vmul.f32 %v1384, 1.442695
        %v1388 = vpow.pop %v1387
        %v1389 = vmul.f32 %v1379, %v1386
        %v1390 = vmul.f32 %v1380, %v1388
        %v1391 = vsub.f32 1.0, %v1389
        %v1392 = vsub.f32 1.0, %v1390
        %v1393 = vmul.f32 %v1353, %v1391
        %v1394 = vmul.f32 %v1354, %v1392
        %v1395 = vadd.f32 %v1393, 1.0
        %v1396 = vadd.f32 %v1394, 1.0
        %v1397 = vmul.f32 %v1347, %v1395
        %v1398 = vmul.f32 %v1348, %v1396
        %v1399 = vpack.c.bf16 %v1398, %v1397
        %v1400 = vld [vmem:[%s595] sm:$0xf]
        %v1401 = vld [vmem:[%s595 + $0x4] sm:$0xf]
        %v1402 = vld [vmem:[%s595 + $0x8] sm:$0xf]
        %v1403 = vld [vmem:[%s595 + $0xc] sm:$0xf]
        %v1404 = vld [vmem:[%s595 + $0x10] sm:$0xf]
        %v1405 = vld [vmem:[%s595 + $0x14] sm:$0xf]
        %v1406 = vld [vmem:[%s595 + $0x18] sm:$0xf]
        %v1407 = vld [vmem:[%s595 + $0x1c] sm:$0xf]
        %v1408 = vld [vmem:[%s595 + $0x20] sm:$0xf]
        %v1409 = vld [vmem:[%s595 + $0x24] sm:$0xf]
        %v1410 = vld [vmem:[%s595 + $0x28] sm:$0xf]
        %v1411 = vld [vmem:[%s595 + $0x2c] sm:$0xf]
        %v1412 = vld [vmem:[%s595 + $0x30] sm:$0xf]
        %v1413 = vld [vmem:[%s595 + $0x34] sm:$0xf]
        %v1414 = vld [vmem:[%s595 + $0x38] sm:$0xf]
        %v1415 = vld [vmem:[%s595 + $0x3c] sm:$0xf]
        %v1432 = vunpack.c.l.b16 %v1400
        %v1433 = vunpack.c.l.b16 %v1401
        %v1434 = vunpack.c.l.b16 %v1402
        %v1435 = vunpack.c.l.b16 %v1403
        %v1436 = vunpack.c.l.b16 %v1404
        %v1437 = vunpack.c.l.b16 %v1405
        %v1438 = vunpack.c.l.b16 %v1406
        %v1439 = vunpack.c.l.b16 %v1407
        %v1440 = vunpack.c.l.b16 %v1408
        %v1441 = vunpack.c.l.b16 %v1409
        %v1442 = vunpack.c.l.b16 %v1410
        %v1443 = vunpack.c.l.b16 %v1411
        %v1444 = vunpack.c.l.b16 %v1412
        %v1445 = vunpack.c.l.b16 %v1413
        %v1446 = vunpack.c.l.b16 %v1414
        %v1447 = vunpack.c.l.b16 %v1415
        %v1448 = vpack.c.b16 %v1433, %v1432
        %v1449 = vpack.c.b16 %v1435, %v1434
        %v1450 = vpack.c.b16 %v1437, %v1436
        %v1451 = vpack.c.b16 %v1439, %v1438
        %v1452 = vpack.c.b16 %v1441, %v1440
        %v1453 = vpack.c.b16 %v1443, %v1442
        %v1454 = vpack.c.b16 %v1445, %v1444
        %v1455 = vpack.c.b16 %v1447, %v1446
        %1464 = vmatpush.bf16.msra.mxu0 %v1455
        %1465 = vmatpush.bf16.msra.mxu0 %v1454
        %1466 = vmatpush.bf16.msra.mxu0 %v1453
        %1467 = vmatpush.bf16.msra.mxu0 %v1452
        %1468 = vmatpush.bf16.msra.mxu0 %v1451
        %1469 = vmatpush.bf16.msra.mxu0 %v1450
        %1470 = vmatpush.bf16.msra.mxu0 %v1449
        %1471 = vmatpush.bf16.msra.mxu0 %v1448
        %1472 = vmatmul.bf16.gmra.mxu0 %v1399
        %v1473 = vpop.f32.mrf.mxu0
        %v1474 = vadd.f32 0.0, %v1473
        %v1475 = vpop.f32.mrf.mxu0
        %v1476 = vadd.f32 0.0, %v1475
        %1477 = vdwg.mxu0
        %v1478 = vadd.f32 %v1251, %v1474
        %v1479 = vadd.f32 %v1252, %v1476
        %v1480 = vld [vmem:[%s598] sm:$0x1]
        %v1482 = vperm.slane %v1480, 0
        %v1484 = vadd.f32 %v1478, %v1482
        %v1485 = vadd.f32 %v1479, %v1482
        %1486 = vst.msk [vmem:[#allocation2] sm:$0xff] %vm614, %v1484
        %1487 = vst.msk [vmem:[#allocation2 + $0x8] sm:$0xf] %vm618, %v1485
        %p1488 = scmp.eq.s32.totalorder %s25, 1
        // Predicated region
        $region77: #{tpu_custom_call.1} parent=71 // pred_check
          %p1489 = pneg %p1488
        $region78: #{tpu_custom_call.1} parent=71 // pred_check_branch
          %1491 = sbr.rel (%p1489) target = $region80
        $region79: #{tpu_custom_call.1} parent=71 // pred_region
          %1492 = vst.msk [vmem:[#allocation4] sm:$0xff] %vm614, %v1484
          %1493 = vst.msk [vmem:[#allocation4 + $0x8] sm:$0xf] %vm618, %v1485
        $region80: #{tpu_custom_call.1} parent=71 // pred_fallthru
          _
        // Predicated region
        $region81: #{tpu_custom_call.1} parent=71 // pred_check
          %p1494 = pneg %p371
        $region82: #{tpu_custom_call.1} parent=71 // pred_check_branch
          %1496 = sbr.rel (%p1494) target = $region84
        $region83: #{tpu_custom_call.1} parent=71 // pred_region
          %1498 = vsyncadd [#allocation5], 0
          %s1499 = sshll.u32 [#allocation4], 4
          %s1500 = int_to_ptr.vmem [resolvable:$true] %s1499
          %s1501 = sshll.u32 %s13, 4
          %s1502 = int_to_ptr.hbm [resolvable:$true] %s1501
          %1507 = dma.vmem_to_hbm [thread:$0]  %s1500, 256, %s1502, [#allocation5], 128, 128, 8
        $region84: #{tpu_custom_call.1} parent=71 // pred_fallthru
          _
        // Predicated region
        $region85: #{tpu_custom_call.1} parent=71 // pred_check
          %p1508 = pneg %p371
        $region86: #{tpu_custom_call.1} parent=71 // pred_check_branch
          %1510 = sbr.rel (%p1508) target = $region88
        $region87: #{tpu_custom_call.1} parent=71 // pred_region
          %1512 = dma.done [#allocation5], 256
        $region88: #{tpu_custom_call.1} parent=71 // pred_fallthru
          _
      $region72: #{tpu_custom_call.1} parent=5 // pred_fallthru
        _
      %p1513 = scmp.le.s32.totalorder 2, %s20
      // Predicated region
      $region89: #{tpu_custom_call.1} parent=5 // pred_check
        %p1514 = pneg %p1513
      $region90: #{tpu_custom_call.1} parent=5 // pred_check_branch
        %1516 = sbr.rel (%p1514) target = $region92
      $region91: #{tpu_custom_call.1} parent=5 // pred_region
        %s1517 = ssub.s32 %s20, 2
      $region92: #{tpu_custom_call.1} parent=5 // pred_fallthru
        _
    $region6: #{tpu_custom_call.1} parent=1 // loop_footer
      %s24 = sadd.s32 1, %s20
    $region7: #{tpu_custom_call.1} parent=1 // loop_footer_branch
      %19 = sbr.rel target = $region3
    $region8: #{tpu_custom_call.1} parent=1 // loop_exit
      _
    %1518 = vsyncpa [#allocation5], 1
    %s1519 = scalar_lea.sflag [#allocation5], 1
    %1520 = vsyncpa %s1519, 1

</llo_original>
